<compile_context>
chip_gen: v6e
topology: v6e:2x2x1
jax: 0.10.0
libtpu: 0.0.40
codegen_flags: <defaults>
</compile_context>

<pallas_src>
import functools
import math

import jax
import jax.numpy as jnp
from jax.experimental import pallas as pl
from jax.experimental.pallas import tpu as pltpu


def _mha_kernel(q_ref, k_ref, v_ref, wq_ref, bq_ref, wk_ref, bk_ref,
                wo_ref, bo_ref, o_ref, *, num_heads, head_dim, tb,
                num_fields, mm_dtype):
    """One batch tile: per-head Q/K projection -> head-batched attention -> output proj."""
    H, hd, F_ = num_heads, head_dim, num_fields
    E = H * hd
    rows = tb * F_
    f32 = jnp.float32

    x_q = q_ref[...].astype(mm_dtype)                       # (rows, E)
    x_k = k_ref[...].astype(mm_dtype)

    # Per-head Q/K projections against pre-transposed, scale-folded weight
    # stacks.  Heads are indexed on the LEADING dim of the stacks, so there is
    # no sub-128 lane slicing (and no relayout) anywhere in the kernel.
    q_heads = []
    k_heads = []
    for h in range(H):
        qh = jnp.dot(x_q, wq_ref[h], preferred_element_type=f32) + bq_ref[h]
        kh = jnp.dot(x_k, wk_ref[h], preferred_element_type=f32) + bk_ref[h]
        q_heads.append(qh.astype(mm_dtype).reshape(tb, F_, hd))
        k_heads.append(kh.astype(mm_dtype).reshape(tb, F_, hd))

    # Head-major stacks (leading-dim concat only) -> a single (H*tb)-batched
    # attention core: one score matmul, one softmax, one weighted sum.
    q_all = jnp.concatenate(q_heads, axis=0)                       # (H*tb, F, hd)
    k_all = jnp.concatenate(k_heads, axis=0)                       # (H*tb, F, hd)
    v_all = v_ref[...].astype(mm_dtype).reshape(H * tb, F_, hd)    # (H*tb, F, hd)

    s = jnp.einsum('bfd,bgd->bfg', q_all, k_all,
                   preferred_element_type=f32)                     # (H*tb, F, F)
    s = s - jnp.max(s, axis=-1, keepdims=True)
    p = jnp.exp(s)
    p = p * pl.reciprocal(jnp.sum(p, axis=-1, keepdims=True), approx=True)
    # TODO(synk): attention-weight dropout omitted (module is run with dropout=0.0).
    attn = jnp.einsum('bfg,bgd->bfd', p.astype(mm_dtype), v_all,
                      preferred_element_type=f32)                  # (H*tb, F, hd)
    attn = attn.astype(mm_dtype)

    # Output projection distributed over heads:
    #   sum_h A_h @ Wo_h == [A_0 | ... | A_{H-1}] @ Wo.T
    # i.e. the lane concat of head outputs is replaced by an accumulation of
    # small MXU matmuls (leading-dim slices only).
    out = jnp.zeros((rows, E), f32)
    for h in range(H):
        a_h = attn[h * tb:(h + 1) * tb].reshape(rows, hd)
        out = out + jnp.dot(a_h, wo_ref[h], preferred_element_type=f32)
    out = out + bo_ref[...]
    o_ref[...] = out.astype(o_ref.dtype)


def mha_inner_product(query, key, value, wq, bq, wk, bk, wo, bo, *,
                      num_heads, matmul_dtype=jnp.bfloat16):
    """query/key/value: (B, F, E).  wq/wk/wo: (E, E) PyTorch Linear weights
    (out, in); bq/bk/bo: (E,)."""
    B, F_, E = query.shape
    H = num_heads
    hd = E // H
    assert hd * H == E, "head dim is not divisible by embed dim"
    scale = float(hd) ** -0.5
    f32 = jnp.float32

    # ---- Parameter prep (tiny, once, in XLA): pre-transpose, fold the
    # 1/sqrt(hd) scale into the Q projection, split into per-head stacks so the
    # kernel only ever indexes heads on a leading dim. ----
    wq_t = (wq.astype(f32) * scale).T                                      # (E_in, E_out)
    wk_t = wk.astype(f32).T
    wo_t = wo.astype(f32).T
    wqh = wq_t.reshape(E, H, hd).transpose(1, 0, 2).astype(matmul_dtype)   # (H, E, hd)
    wkh = wk_t.reshape(E, H, hd).transpose(1, 0, 2).astype(matmul_dtype)   # (H, E, hd)
    woh = wo_t.reshape(H, hd, E).astype(matmul_dtype)                      # (H, hd, E)
    bqh = (bq.astype(f32) * scale).reshape(H, 1, hd)
    bkh = bk.astype(f32).reshape(H, 1, hd)
    bo2 = bo.astype(f32).reshape(1, E)

    # ---- Batch-tile selection (VMEM-budget derived). ----
    # rows per grid step (tb * F) must stay sublane-aligned for the activation
    # dtype (8 rows for 4-byte, 16 for 2-byte) unless it covers the whole array.
    act_itemsize = jnp.dtype(query.dtype).itemsize
    row_align = 8 * max(1, 4 // act_itemsize)
    m = row_align // math.gcd(F_, row_align)       # minimal tb keeping rows aligned

    vmem_cap = 64 * 1024 * 1024                    # conservative default (v7x physical)
    try:
        info = pltpu.get_tpu_info()
        vmem_cap = int(getattr(info, "vmem_capacity_bytes", vmem_cap))
    except Exception:
        pass
    budget = (vmem_cap * 3) // 4                   # headroom for the compiler

    w_bytes = jnp.dtype(matmul_dtype).itemsize
    out_bytes = jnp.dtype(query.dtype).itemsize

    def per_step_bytes(tb):
        rows = tb * F_
        n = H * tb
        b = 2 * 3 * rows * E * act_itemsize        # double-buffered q/k/v blocks
        b += 2 * rows * E * out_bytes              # double-buffered output block
        b += 2 * (3 * E * E * w_bytes + 3 * E * 4)  # weight/bias stacks
        b += 8 * rows * E * 4                      # q/k/attn/out f32 temporaries
        b += 3 * n * F_ * F_ * 4                   # scores / exp / probs
        return b

    # Keep >= 2 grid steps when B >= 2 so the "parallel" batch axis can shard
    # across both TensorCores on dual-core chips (v7x).  On single-core chips
    # (v5e/v6e) the extra step costs ~0.35us, which is noise.
    cap_tb = (B + 1) // 2 if B >= 2 else 1
    cap_tb = min(cap_tb, max(1, 8192 // max(F_, 1)))     # sanity cap on rows/step
    cap_tb = max(m, ((cap_tb + m - 1) // m) * m)

    tb = m
    cand = m
    while cand <= cap_tb and per_step_bytes(cand) <= budget:
        tb = cand
        cand += m

    step_bytes = per_step_bytes(tb)
    vmem_limit = max(step_bytes + (4 << 20), 32 << 20)
    vmem_limit = int(min(vmem_limit, vmem_cap - (2 << 20)))

    # ---- Pad B to a multiple of tb (avoids degenerating into one tiny slab
    # per batch element when B has no good divisor); padded rows are sliced
    # off the output (zeros -> finite uniform softmax, no NaNs). ----
    B_pad = ((B + tb - 1) // tb) * tb
    if B_pad != B:
        pad_cfg = ((0, B_pad - B), (0, 0), (0, 0))
        query_p = jnp.pad(query, pad_cfg)
        key_p = jnp.pad(key, pad_cfg)
        value_p = jnp.pad(value, pad_cfg)
    else:
        query_p, key_p, value_p = query, key, value

    rows = tb * F_
    # Activations keep the caller's dtype for the HBM->VMEM blocks; the MXU
    # operand cast to bf16 happens in-kernel.  Value is pre-arranged head-major
    # once in XLA so the kernel never slices heads out of the lane dim.
    q2 = query_p.reshape(B_pad * F_, E)
    k2 = key_p.reshape(B_pad * F_, E)
    vh = value_p.reshape(B_pad, F_, H, hd).transpose(2, 0, 1, 3)   # (H, B_pad, F, hd)

    kernel = functools.partial(_mha_kernel, num_heads=H, head_dim=hd, tb=tb,
                               num_fields=F_, mm_dtype=matmul_dtype)

    out2 = pl.pallas_call(
        kernel,
        out_shape=jax.ShapeDtypeStruct((B_pad * F_, E), query.dtype),
        grid=(B_pad // tb,),
        in_specs=[
            pl.BlockSpec((rows, E), lambda i: (i, 0)),              # query rows
            pl.BlockSpec((rows, E), lambda i: (i, 0)),              # key rows
            pl.BlockSpec((H, tb, F_, hd), lambda i: (0, i, 0, 0)),  # value (head-major)
            pl.BlockSpec((H, E, hd), lambda i: (0, 0, 0)),          # Wq stack (scale folded, pre-T)
            pl.BlockSpec((H, 1, hd), lambda i: (0, 0, 0)),          # bq stack (scale folded)
            pl.BlockSpec((H, E, hd), lambda i: (0, 0, 0)),          # Wk stack (pre-T)
            pl.BlockSpec((H, 1, hd), lambda i: (0, 0, 0)),          # bk stack
            pl.BlockSpec((H, hd, E), lambda i: (0, 0, 0)),          # Wo stack (pre-T)
            pl.BlockSpec((1, E), lambda i: (0, 0)),                 # bo
        ],
        out_specs=pl.BlockSpec((rows, E), lambda i: (i, 0)),
        compiler_params=pltpu.CompilerParams(
            dimension_semantics=("parallel",),
            vmem_limit_bytes=vmem_limit),
    )(q2, k2, vh, wqh, bqh, wkh, bkh, woh, bo2)

    return out2.reshape(B_pad, F_, E)[:B]


def reference(query, key, value, wq, bq, wk, bk, wo, bo, *, num_heads):
    """Pure-JAX f32 reference matching the PyTorch forward exactly."""
    B, F_, E = query.shape
    hd = E // num_heads
    scale = float(hd) ** -0.5
    q = (query @ wq.T + bq) * scale
    k = key @ wk.T + bk
    q = q.reshape(B, F_, num_heads, hd)
    k = k.reshape(B, F_, num_heads, hd)
    v = value.reshape(B, F_, num_heads, hd)
    s = jnp.einsum('bfhd,bghd->bhfg', q, k)
    p = jax.nn.softmax(s, axis=-1)
    o = jnp.einsum('bhfg,bghd->bfhd', p, v).reshape(B, F_, E)
    return o @ wo.T + bo


if __name__ == "__main__":
    # Small shapes consistent with the module's forward:
    #   query/key/value: (bsz, num_fields, embed_dim)
    bsz, num_fields, embed_dim, num_heads = 2, 8, 32, 4

    key0 = jax.random.PRNGKey(0)
    keys = jax.random.split(key0, 9)

    query = jax.random.normal(keys[0], (bsz, num_fields, embed_dim), jnp.float32)
    key_in = jax.random.normal(keys[1], (bsz, num_fields, embed_dim), jnp.float32)
    value = jax.random.normal(keys[2], (bsz, num_fields, embed_dim), jnp.float32)

    # Deterministic parameter init (PyTorch Linear weight shape = (out, in)).
    wq = 0.1 * jax.random.normal(keys[3], (embed_dim, embed_dim), jnp.float32)
    bq = 0.1 * jax.random.normal(keys[4], (embed_dim,), jnp.float32)
    wk = 0.1 * jax.random.normal(keys[5], (embed_dim, embed_dim), jnp.float32)
    bk = 0.1 * jax.random.normal(keys[6], (embed_dim,), jnp.float32)
    wo = 0.1 * jax.random.normal(keys[7], (embed_dim, embed_dim), jnp.float32)
    bo = 0.1 * jax.random.normal(keys[8], (embed_dim,), jnp.float32)

    out = mha_inner_product(query, key_in, value, wq, bq, wk, bk, wo, bo,
                            num_heads=num_heads)
    out = jax.block_until_ready(out)

    ref = reference(query, key_in, value, wq, bq, wk, bk, wo, bo,
                    num_heads=num_heads)
    assert out.shape == (bsz, num_fields, embed_dim)
    err = float(jnp.max(jnp.abs(out - ref)))
    # Tolerance reflects bf16 MXU operands (with f32 accumulation) and the EUP
    # approximate reciprocal in the softmax normalization.
    assert jnp.allclose(out, ref, atol=3e-2, rtol=3e-2), \
        f"mismatch, max abs err = {err}"

    print("KERNEL_OK")
</pallas_src>

<mosaic_0001>
module attributes {stable_mosaic.version = 11 : i64} {
  func.func @_mha_kernel(%arg0: i32, %arg1: memref<8x32xf32, #tpu.memory_space<vmem>>, %arg2: memref<8x32xf32, #tpu.memory_space<vmem>>, %arg3: memref<4x1x8x8xf32, #tpu.memory_space<vmem>>, %arg4: memref<4x32x8xbf16, #tpu.memory_space<vmem>>, %arg5: memref<4x1x8xf32, #tpu.memory_space<vmem>>, %arg6: memref<4x32x8xbf16, #tpu.memory_space<vmem>>, %arg7: memref<4x1x8xf32, #tpu.memory_space<vmem>>, %arg8: memref<4x8x32xbf16, #tpu.memory_space<vmem>>, %arg9: memref<1x32xf32, #tpu.memory_space<vmem>>, %arg10: memref<8x32xf32, #tpu.memory_space<vmem>>) attributes {dimension_semantics = [#tpu.dimension_semantics<parallel>], iteration_bounds = array<i64: 2>, scalar_prefetch = 0 : i64, scratch_operands = 0 : i64, tpu.core_type = #tpu.core_type<tc>, window_params = [{transform_indices = @transform_0, window_bounds = array<i64: 8, 32>}, {transform_indices = @transform_1, window_bounds = array<i64: 8, 32>}, {transform_indices = @transform_2, window_bounds = array<i64: 4, 1, 8, 8>}, {pipeline_mode = #tpu.pipeline_mode<synchronous>, transform_indices = @transform_3, window_bounds = array<i64: 4, 32, 8>}, {pipeline_mode = #tpu.pipeline_mode<synchronous>, transform_indices = @transform_4, window_bounds = array<i64: 4, 1, 8>}, {pipeline_mode = #tpu.pipeline_mode<synchronous>, transform_indices = @transform_5, window_bounds = array<i64: 4, 32, 8>}, {pipeline_mode = #tpu.pipeline_mode<synchronous>, transform_indices = @transform_6, window_bounds = array<i64: 4, 1, 8>}, {pipeline_mode = #tpu.pipeline_mode<synchronous>, transform_indices = @transform_7, window_bounds = array<i64: 4, 8, 32>}, {pipeline_mode = #tpu.pipeline_mode<synchronous>, transform_indices = @transform_8, window_bounds = array<i64: 1, 32>}, {transform_indices = @transform_9, window_bounds = array<i64: 8, 32>}]} {
    %c0 = arith.constant 0 : index
    %c0_0 = arith.constant 0 : index
    %0 = vector.load %arg1[%c0, %c0_0] : memref<8x32xf32, #tpu.memory_space<vmem>>, vector<8x32xf32>
    %1 = arith.truncf %0 : vector<8x32xf32> to vector<8x32xbf16>
    %c0_1 = arith.constant 0 : index
    %c0_2 = arith.constant 0 : index
    %2 = vector.load %arg2[%c0_1, %c0_2] : memref<8x32xf32, #tpu.memory_space<vmem>>, vector<8x32xf32>
    %3 = arith.truncf %2 : vector<8x32xf32> to vector<8x32xbf16>
    %c0_3 = arith.constant 0 : index
    %c0_4 = arith.constant 0 : index
    %c0_5 = arith.constant 0 : index
    %4 = vector.load %arg4[%c0_3, %c0_4, %c0_5] : memref<4x32x8xbf16, #tpu.memory_space<vmem>>, vector<1x32x8xbf16>
    %5 = vector.shape_cast %4 : vector<1x32x8xbf16> to vector<32x8xbf16>
    %cst = arith.constant dense<0.000000e+00> : vector<8x8xf32>
    %6 = tpu.matmul %1, %5, %cst {dimension_numbers = #tpu.dot_dimension_numbers<[1], [0], [0], [1], [0, 0, 1, 1], [], []>} : vector<8x32xbf16>, vector<32x8xbf16>, vector<8x8xf32> -> vector<8x8xf32>
    %c0_6 = arith.constant 0 : index
    %c0_7 = arith.constant 0 : index
    %c0_8 = arith.constant 0 : index
    %7 = vector.load %arg5[%c0_6, %c0_7, %c0_8] : memref<4x1x8xf32, #tpu.memory_space<vmem>>, vector<1x1x8xf32>
    %8 = vector.shape_cast %7 : vector<1x1x8xf32> to vector<1x8xf32>
    %9 = vector.broadcast %8 : vector<1x8xf32> to vector<8x8xf32>
    %10 = arith.addf %6, %9 : vector<8x8xf32>
    %c0_9 = arith.constant 0 : index
    %c0_10 = arith.constant 0 : index
    %c0_11 = arith.constant 0 : index
    %11 = vector.load %arg6[%c0_9, %c0_10, %c0_11] : memref<4x32x8xbf16, #tpu.memory_space<vmem>>, vector<1x32x8xbf16>
    %12 = vector.shape_cast %11 : vector<1x32x8xbf16> to vector<32x8xbf16>
    %cst_12 = arith.constant dense<0.000000e+00> : vector<8x8xf32>
    %13 = tpu.matmul %3, %12, %cst_12 {dimension_numbers = #tpu.dot_dimension_numbers<[1], [0], [0], [1], [0, 0, 1, 1], [], []>} : vector<8x32xbf16>, vector<32x8xbf16>, vector<8x8xf32> -> vector<8x8xf32>
    %c0_13 = arith.constant 0 : index
    %c0_14 = arith.constant 0 : index
    %c0_15 = arith.constant 0 : index
    %14 = vector.load %arg7[%c0_13, %c0_14, %c0_15] : memref<4x1x8xf32, #tpu.memory_space<vmem>>, vector<1x1x8xf32>
    %15 = vector.shape_cast %14 : vector<1x1x8xf32> to vector<1x8xf32>
    %16 = vector.broadcast %15 : vector<1x8xf32> to vector<8x8xf32>
    %17 = arith.addf %13, %16 : vector<8x8xf32>
    %18 = arith.truncf %10 : vector<8x8xf32> to vector<8x8xbf16>
    %19 = vector.shape_cast %18 : vector<8x8xbf16> to vector<1x8x8xbf16>
    %20 = arith.truncf %17 : vector<8x8xf32> to vector<8x8xbf16>
    %21 = vector.shape_cast %20 : vector<8x8xbf16> to vector<1x8x8xbf16>
    %c1 = arith.constant 1 : index
    %c0_16 = arith.constant 0 : index
    %c0_17 = arith.constant 0 : index
    %22 = vector.load %arg4[%c1, %c0_16, %c0_17] : memref<4x32x8xbf16, #tpu.memory_space<vmem>>, vector<1x32x8xbf16>
    %23 = vector.shape_cast %22 : vector<1x32x8xbf16> to vector<32x8xbf16>
    %cst_18 = arith.constant dense<0.000000e+00> : vector<8x8xf32>
    %24 = tpu.matmul %1, %23, %cst_18 {dimension_numbers = #tpu.dot_dimension_numbers<[1], [0], [0], [1], [0, 0, 1, 1], [], []>} : vector<8x32xbf16>, vector<32x8xbf16>, vector<8x8xf32> -> vector<8x8xf32>
    %c1_19 = arith.constant 1 : index
    %c0_20 = arith.constant 0 : index
    %c0_21 = arith.constant 0 : index
    %25 = vector.load %arg5[%c1_19, %c0_20, %c0_21] : memref<4x1x8xf32, #tpu.memory_space<vmem>>, vector<1x1x8xf32>
    %26 = vector.shape_cast %25 : vector<1x1x8xf32> to vector<1x8xf32>
    %27 = vector.broadcast %26 : vector<1x8xf32> to vector<8x8xf32>
    %28 = arith.addf %24, %27 : vector<8x8xf32>
    %c1_22 = arith.constant 1 : index
    %c0_23 = arith.constant 0 : index
    %c0_24 = arith.constant 0 : index
    %29 = vector.load %arg6[%c1_22, %c0_23, %c0_24] : memref<4x32x8xbf16, #tpu.memory_space<vmem>>, vector<1x32x8xbf16>
    %30 = vector.shape_cast %29 : vector<1x32x8xbf16> to vector<32x8xbf16>
    %cst_25 = arith.constant dense<0.000000e+00> : vector<8x8xf32>
    %31 = tpu.matmul %3, %30, %cst_25 {dimension_numbers = #tpu.dot_dimension_numbers<[1], [0], [0], [1], [0, 0, 1, 1], [], []>} : vector<8x32xbf16>, vector<32x8xbf16>, vector<8x8xf32> -> vector<8x8xf32>
    %c1_26 = arith.constant 1 : index
    %c0_27 = arith.constant 0 : index
    %c0_28 = arith.constant 0 : index
    %32 = vector.load %arg7[%c1_26, %c0_27, %c0_28] : memref<4x1x8xf32, #tpu.memory_space<vmem>>, vector<1x1x8xf32>
    %33 = vector.shape_cast %32 : vector<1x1x8xf32> to vector<1x8xf32>
    %34 = vector.broadcast %33 : vector<1x8xf32> to vector<8x8xf32>
    %35 = arith.addf %31, %34 : vector<8x8xf32>
    %36 = arith.truncf %28 : vector<8x8xf32> to vector<8x8xbf16>
    %37 = vector.shape_cast %36 : vector<8x8xbf16> to vector<1x8x8xbf16>
    %38 = arith.truncf %35 : vector<8x8xf32> to vector<8x8xbf16>
    %39 = vector.shape_cast %38 : vector<8x8xbf16> to vector<1x8x8xbf16>
    %c2 = arith.constant 2 : index
    %c0_29 = arith.constant 0 : index
    %c0_30 = arith.constant 0 : index
    %40 = vector.load %arg4[%c2, %c0_29, %c0_30] : memref<4x32x8xbf16, #tpu.memory_space<vmem>>, vector<1x32x8xbf16>
    %41 = vector.shape_cast %40 : vector<1x32x8xbf16> to vector<32x8xbf16>
    %cst_31 = arith.constant dense<0.000000e+00> : vector<8x8xf32>
    %42 = tpu.matmul %1, %41, %cst_31 {dimension_numbers = #tpu.dot_dimension_numbers<[1], [0], [0], [1], [0, 0, 1, 1], [], []>} : vector<8x32xbf16>, vector<32x8xbf16>, vector<8x8xf32> -> vector<8x8xf32>
    %c2_32 = arith.constant 2 : index
    %c0_33 = arith.constant 0 : index
    %c0_34 = arith.constant 0 : index
    %43 = vector.load %arg5[%c2_32, %c0_33, %c0_34] : memref<4x1x8xf32, #tpu.memory_space<vmem>>, vector<1x1x8xf32>
    %44 = vector.shape_cast %43 : vector<1x1x8xf32> to vector<1x8xf32>
    %45 = vector.broadcast %44 : vector<1x8xf32> to vector<8x8xf32>
    %46 = arith.addf %42, %45 : vector<8x8xf32>
    %c2_35 = arith.constant 2 : index
    %c0_36 = arith.constant 0 : index
    %c0_37 = arith.constant 0 : index
    %47 = vector.load %arg6[%c2_35, %c0_36, %c0_37] : memref<4x32x8xbf16, #tpu.memory_space<vmem>>, vector<1x32x8xbf16>
    %48 = vector.shape_cast %47 : vector<1x32x8xbf16> to vector<32x8xbf16>
    %cst_38 = arith.constant dense<0.000000e+00> : vector<8x8xf32>
    %49 = tpu.matmul %3, %48, %cst_38 {dimension_numbers = #tpu.dot_dimension_numbers<[1], [0], [0], [1], [0, 0, 1, 1], [], []>} : vector<8x32xbf16>, vector<32x8xbf16>, vector<8x8xf32> -> vector<8x8xf32>
    %c2_39 = arith.constant 2 : index
    %c0_40 = arith.constant 0 : index
    %c0_41 = arith.constant 0 : index
    %50 = vector.load %arg7[%c2_39, %c0_40, %c0_41] : memref<4x1x8xf32, #tpu.memory_space<vmem>>, vector<1x1x8xf32>
    %51 = vector.shape_cast %50 : vector<1x1x8xf32> to vector<1x8xf32>
    %52 = vector.broadcast %51 : vector<1x8xf32> to vector<8x8xf32>
    %53 = arith.addf %49, %52 : vector<8x8xf32>
    %54 = arith.truncf %46 : vector<8x8xf32> to vector<8x8xbf16>
    %55 = vector.shape_cast %54 : vector<8x8xbf16> to vector<1x8x8xbf16>
    %56 = arith.truncf %53 : vector<8x8xf32> to vector<8x8xbf16>
    %57 = vector.shape_cast %56 : vector<8x8xbf16> to vector<1x8x8xbf16>
    %c3 = arith.constant 3 : index
    %c0_42 = arith.constant 0 : index
    %c0_43 = arith.constant 0 : index
    %58 = vector.load %arg4[%c3, %c0_42, %c0_43] : memref<4x32x8xbf16, #tpu.memory_space<vmem>>, vector<1x32x8xbf16>
    %59 = vector.shape_cast %58 : vector<1x32x8xbf16> to vector<32x8xbf16>
    %cst_44 = arith.constant dense<0.000000e+00> : vector<8x8xf32>
    %60 = tpu.matmul %1, %59, %cst_44 {dimension_numbers = #tpu.dot_dimension_numbers<[1], [0], [0], [1], [0, 0, 1, 1], [], []>} : vector<8x32xbf16>, vector<32x8xbf16>, vector<8x8xf32> -> vector<8x8xf32>
    %c3_45 = arith.constant 3 : index
    %c0_46 = arith.constant 0 : index
    %c0_47 = arith.constant 0 : index
    %61 = vector.load %arg5[%c3_45, %c0_46, %c0_47] : memref<4x1x8xf32, #tpu.memory_space<vmem>>, vector<1x1x8xf32>
    %62 = vector.shape_cast %61 : vector<1x1x8xf32> to vector<1x8xf32>
    %63 = vector.broadcast %62 : vector<1x8xf32> to vector<8x8xf32>
    %64 = arith.addf %60, %63 : vector<8x8xf32>
    %c3_48 = arith.constant 3 : index
    %c0_49 = arith.constant 0 : index
    %c0_50 = arith.constant 0 : index
    %65 = vector.load %arg6[%c3_48, %c0_49, %c0_50] : memref<4x32x8xbf16, #tpu.memory_space<vmem>>, vector<1x32x8xbf16>
    %66 = vector.shape_cast %65 : vector<1x32x8xbf16> to vector<32x8xbf16>
    %cst_51 = arith.constant dense<0.000000e+00> : vector<8x8xf32>
    %67 = tpu.matmul %3, %66, %cst_51 {dimension_numbers = #tpu.dot_dimension_numbers<[1], [0], [0], [1], [0, 0, 1, 1], [], []>} : vector<8x32xbf16>, vector<32x8xbf16>, vector<8x8xf32> -> vector<8x8xf32>
    %c3_52 = arith.constant 3 : index
    %c0_53 = arith.constant 0 : index
    %c0_54 = arith.constant 0 : index
    %68 = vector.load %arg7[%c3_52, %c0_53, %c0_54] : memref<4x1x8xf32, #tpu.memory_space<vmem>>, vector<1x1x8xf32>
    %69 = vector.shape_cast %68 : vector<1x1x8xf32> to vector<1x8xf32>
    %70 = vector.broadcast %69 : vector<1x8xf32> to vector<8x8xf32>
    %71 = arith.addf %67, %70 : vector<8x8xf32>
    %72 = arith.truncf %64 : vector<8x8xf32> to vector<8x8xbf16>
    %73 = vector.shape_cast %72 : vector<8x8xbf16> to vector<1x8x8xbf16>
    %74 = arith.truncf %71 : vector<8x8xf32> to vector<8x8xbf16>
    %75 = vector.shape_cast %74 : vector<8x8xbf16> to vector<1x8x8xbf16>
    %76 = tpu.concatenate %19, %37, %55, %73 in 0 : vector<1x8x8xbf16>, vector<1x8x8xbf16>, vector<1x8x8xbf16>, vector<1x8x8xbf16> -> vector<4x8x8xbf16>
    %77 = tpu.concatenate %21, %39, %57, %75 in 0 : vector<1x8x8xbf16>, vector<1x8x8xbf16>, vector<1x8x8xbf16>, vector<1x8x8xbf16> -> vector<4x8x8xbf16>
    %c0_55 = arith.constant 0 : index
    %c0_56 = arith.constant 0 : index
    %c0_57 = arith.constant 0 : index
    %c0_58 = arith.constant 0 : index
    %78 = vector.load %arg3[%c0_55, %c0_56, %c0_57, %c0_58] : memref<4x1x8x8xf32, #tpu.memory_space<vmem>>, vector<4x1x8x8xf32>
    %79 = arith.truncf %78 : vector<4x1x8x8xf32> to vector<4x1x8x8xbf16>
    %80 = vector.shape_cast %79 : vector<4x1x8x8xbf16> to vector<4x8x8xbf16>
    "tpu.trace_start"() <{level = 10 : i32, message = "bfd,bgd->bfg"}> : () -> ()
    %cst_59 = arith.constant dense<0.000000e+00> : vector<4x8x8xf32>
    %81 = tpu.matmul %76, %77, %cst_59 {dimension_numbers = #tpu.dot_dimension_numbers<[2], [2], [1], [1], [0, 0, 0, 1, 1, 1], [0], [0]>} : vector<4x8x8xbf16>, vector<4x8x8xbf16>, vector<4x8x8xf32> -> vector<4x8x8xf32>
    "tpu.trace_stop"() : () -> ()
    %cst_60 = arith.constant dense<0xFF800000> : vector<4x8xf32>
    %82 = vector.multi_reduction <maximumf>, %81, %cst_60 [2] : vector<4x8x8xf32> to vector<4x8xf32>
    %83 = vector.shape_cast %82 : vector<4x8xf32> to vector<4x8x1xf32>
    %84 = vector.broadcast %83 : vector<4x8x1xf32> to vector<4x8x8xf32>
    %85 = arith.subf %81, %84 : vector<4x8x8xf32>
    %86 = math.exp %85 : vector<4x8x8xf32>
    %cst_61 = arith.constant dense<0.000000e+00> : vector<4x8xf32>
    %87 = vector.multi_reduction <add>, %86, %cst_61 [2] : vector<4x8x8xf32> to vector<4x8xf32>
    %88 = vector.shape_cast %87 : vector<4x8xf32> to vector<4x8x1xf32>
    %89 = tpu.reciprocal %88 {approx = true} : vector<4x8x1xf32> -> vector<4x8x1xf32>
    %90 = vector.broadcast %89 : vector<4x8x1xf32> to vector<4x8x8xf32>
    %91 = arith.mulf %86, %90 : vector<4x8x8xf32>
    %92 = arith.truncf %91 : vector<4x8x8xf32> to vector<4x8x8xbf16>
    "tpu.trace_start"() <{level = 10 : i32, message = "bfg,bgd->bfd"}> : () -> ()
    %cst_62 = arith.constant dense<0.000000e+00> : vector<4x8x8xf32>
    %93 = tpu.matmul %92, %80, %cst_62 {dimension_numbers = #tpu.dot_dimension_numbers<[2], [1], [1], [2], [0, 0, 0, 1, 1, 2], [0], [0]>} : vector<4x8x8xbf16>, vector<4x8x8xbf16>, vector<4x8x8xf32> -> vector<4x8x8xf32>
    "tpu.trace_stop"() : () -> ()
    %94 = arith.truncf %93 : vector<4x8x8xf32> to vector<4x8x8xbf16>
    %cst_63 = arith.constant 0.000000e+00 : f32
    %95 = vector.broadcast %cst_63 : f32 to vector<8x32xf32>
    %96 = vector.extract_strided_slice %94 {offsets = [0, 0, 0], sizes = [1, 8, 8], strides = [1, 1, 1]} : vector<4x8x8xbf16> to vector<1x8x8xbf16>
    %97 = vector.shape_cast %96 : vector<1x8x8xbf16> to vector<8x8xbf16>
    %c0_64 = arith.constant 0 : index
    %c0_65 = arith.constant 0 : index
    %c0_66 = arith.constant 0 : index
    %98 = vector.load %arg8[%c0_64, %c0_65, %c0_66] : memref<4x8x32xbf16, #tpu.memory_space<vmem>>, vector<1x8x32xbf16>
    %99 = vector.shape_cast %98 : vector<1x8x32xbf16> to vector<8x32xbf16>
    %cst_67 = arith.constant dense<0.000000e+00> : vector<8x32xf32>
    %100 = tpu.matmul %97, %99, %cst_67 {dimension_numbers = #tpu.dot_dimension_numbers<[1], [0], [0], [1], [0, 0, 1, 1], [], []>} : vector<8x8xbf16>, vector<8x32xbf16>, vector<8x32xf32> -> vector<8x32xf32>
    %101 = arith.addf %95, %100 : vector<8x32xf32>
    %102 = vector.extract_strided_slice %94 {offsets = [1, 0, 0], sizes = [1, 8, 8], strides = [1, 1, 1]} : vector<4x8x8xbf16> to vector<1x8x8xbf16>
    %103 = vector.shape_cast %102 : vector<1x8x8xbf16> to vector<8x8xbf16>
    %c1_68 = arith.constant 1 : index
    %c0_69 = arith.constant 0 : index
    %c0_70 = arith.constant 0 : index
    %104 = vector.load %arg8[%c1_68, %c0_69, %c0_70] : memref<4x8x32xbf16, #tpu.memory_space<vmem>>, vector<1x8x32xbf16>
    %105 = vector.shape_cast %104 : vector<1x8x32xbf16> to vector<8x32xbf16>
    %cst_71 = arith.constant dense<0.000000e+00> : vector<8x32xf32>
    %106 = tpu.matmul %103, %105, %cst_71 {dimension_numbers = #tpu.dot_dimension_numbers<[1], [0], [0], [1], [0, 0, 1, 1], [], []>} : vector<8x8xbf16>, vector<8x32xbf16>, vector<8x32xf32> -> vector<8x32xf32>
    %107 = arith.addf %101, %106 : vector<8x32xf32>
    %108 = vector.extract_strided_slice %94 {offsets = [2, 0, 0], sizes = [1, 8, 8], strides = [1, 1, 1]} : vector<4x8x8xbf16> to vector<1x8x8xbf16>
    %109 = vector.shape_cast %108 : vector<1x8x8xbf16> to vector<8x8xbf16>
    %c2_72 = arith.constant 2 : index
    %c0_73 = arith.constant 0 : index
    %c0_74 = arith.constant 0 : index
    %110 = vector.load %arg8[%c2_72, %c0_73, %c0_74] : memref<4x8x32xbf16, #tpu.memory_space<vmem>>, vector<1x8x32xbf16>
    %111 = vector.shape_cast %110 : vector<1x8x32xbf16> to vector<8x32xbf16>
    %cst_75 = arith.constant dense<0.000000e+00> : vector<8x32xf32>
    %112 = tpu.matmul %109, %111, %cst_75 {dimension_numbers = #tpu.dot_dimension_numbers<[1], [0], [0], [1], [0, 0, 1, 1], [], []>} : vector<8x8xbf16>, vector<8x32xbf16>, vector<8x32xf32> -> vector<8x32xf32>
    %113 = arith.addf %107, %112 : vector<8x32xf32>
    %114 = vector.extract_strided_slice %94 {offsets = [3, 0, 0], sizes = [1, 8, 8], strides = [1, 1, 1]} : vector<4x8x8xbf16> to vector<1x8x8xbf16>
    %115 = vector.shape_cast %114 : vector<1x8x8xbf16> to vector<8x8xbf16>
    %c3_76 = arith.constant 3 : index
    %c0_77 = arith.constant 0 : index
    %c0_78 = arith.constant 0 : index
    %116 = vector.load %arg8[%c3_76, %c0_77, %c0_78] : memref<4x8x32xbf16, #tpu.memory_space<vmem>>, vector<1x8x32xbf16>
    %117 = vector.shape_cast %116 : vector<1x8x32xbf16> to vector<8x32xbf16>
    %cst_79 = arith.constant dense<0.000000e+00> : vector<8x32xf32>
    %118 = tpu.matmul %115, %117, %cst_79 {dimension_numbers = #tpu.dot_dimension_numbers<[1], [0], [0], [1], [0, 0, 1, 1], [], []>} : vector<8x8xbf16>, vector<8x32xbf16>, vector<8x32xf32> -> vector<8x32xf32>
    %119 = arith.addf %113, %118 : vector<8x32xf32>
    %c0_80 = arith.constant 0 : index
    %c0_81 = arith.constant 0 : index
    %120 = vector.load %arg9[%c0_80, %c0_81] : memref<1x32xf32, #tpu.memory_space<vmem>>, vector<1x32xf32>
    %121 = vector.broadcast %120 : vector<1x32xf32> to vector<8x32xf32>
    %122 = arith.addf %119, %121 : vector<8x32xf32>
    %c0_82 = arith.constant 0 : index
    %c0_83 = arith.constant 0 : index
    %123 = vector.load %arg10[%c0_82, %c0_83] : memref<8x32xf32, #tpu.memory_space<vmem>>, vector<8x32xf32>
    tpu.vector_store %arg10[%c0_82, %c0_83], %122 {strides = array<i32>} : memref<8x32xf32, #tpu.memory_space<vmem>>, vector<8x32xf32>,
    return
  }
  func.func @transform_0(%arg0: i32) -> (i32, i32) {
    %c0_i32 = arith.constant 0 : i32
    %c0_i32_0 = arith.constant 0 : i32
    return %arg0, %c0_i32 : i32, i32
  }
  func.func @transform_1(%arg0: i32) -> (i32, i32) {
    %c0_i32 = arith.constant 0 : i32
    %c0_i32_0 = arith.constant 0 : i32
    return %arg0, %c0_i32 : i32, i32
  }
  func.func @transform_2(%arg0: i32) -> (i32, i32, i32, i32) {
    %c0_i32 = arith.constant 0 : i32
    %c0_i32_0 = arith.constant 0 : i32
    %c0_i32_1 = arith.constant 0 : i32
    %c0_i32_2 = arith.constant 0 : i32
    return %c0_i32, %arg0, %c0_i32_0, %c0_i32_1 : i32, i32, i32, i32
  }
  func.func @transform_3(%arg0: i32) -> (i32, i32, i32) {
    %c0_i32 = arith.constant 0 : i32
    %c0_i32_0 = arith.constant 0 : i32
    %c0_i32_1 = arith.constant 0 : i32
    %c0_i32_2 = arith.constant 0 : i32
    return %c0_i32, %c0_i32_0, %c0_i32_1 : i32, i32, i32
  }
  func.func @transform_4(%arg0: i32) -> (i32, i32, i32) {
    %c0_i32 = arith.constant 0 : i32
    %c0_i32_0 = arith.constant 0 : i32
    %c0_i32_1 = arith.constant 0 : i32
    %c0_i32_2 = arith.constant 0 : i32
    return %c0_i32, %c0_i32_0, %c0_i32_1 : i32, i32, i32
  }
  func.func @transform_5(%arg0: i32) -> (i32, i32, i32) {
    %c0_i32 = arith.constant 0 : i32
    %c0_i32_0 = arith.constant 0 : i32
    %c0_i32_1 = arith.constant 0 : i32
    %c0_i32_2 = arith.constant 0 : i32
    return %c0_i32, %c0_i32_0, %c0_i32_1 : i32, i32, i32
  }
  func.func @transform_6(%arg0: i32) -> (i32, i32, i32) {
    %c0_i32 = arith.constant 0 : i32
    %c0_i32_0 = arith.constant 0 : i32
    %c0_i32_1 = arith.constant 0 : i32
    %c0_i32_2 = arith.constant 0 : i32
    return %c0_i32, %c0_i32_0, %c0_i32_1 : i32, i32, i32
  }
  func.func @transform_7(%arg0: i32) -> (i32, i32, i32) {
    %c0_i32 = arith.constant 0 : i32
    %c0_i32_0 = arith.constant 0 : i32
    %c0_i32_1 = arith.constant 0 : i32
    %c0_i32_2 = arith.constant 0 : i32
    return %c0_i32, %c0_i32_0, %c0_i32_1 : i32, i32, i32
  }
  func.func @transform_8(%arg0: i32) -> (i32, i32) {
    %c0_i32 = arith.constant 0 : i32
    %c0_i32_0 = arith.constant 0 : i32
    %c0_i32_1 = arith.constant 0 : i32
    return %c0_i32, %c0_i32_0 : i32, i32
  }
  func.func @transform_9(%arg0: i32) -> (i32, i32) {
    %c0_i32 = arith.constant 0 : i32
    %c0_i32_0 = arith.constant 0 : i32
    return %arg0, %c0_i32 : i32, i32
  }
}

</mosaic_0001>

<llo_original>
// kernel: tpu_custom_call.1
$region0: #{tpu_custom_call.1}
  #allocation0 [shape = 'u32[]', space=smem, size = 0x4, offset = 0x4, fixed_abs, tag = 'smem constant byte address 0x4 - core index']
  #allocation1 [shape = 'u32[144,128]{1,0:T(1,128)}', space=vmem, size = 0x12000, scoped, tag = 'internal scratch']
  %s0 = inlined_call_operand.vmem [shape: f32[16,32], index: 0, kind: input, shape index: {}]
  %s1 = inlined_call_operand.vmem [shape: f32[16,32], index: 1, kind: input, shape index: {}]
  %s2 = inlined_call_operand.vmem [shape: f32[4,2,8,8], index: 2, kind: input, shape index: {}]
  %s3 = inlined_call_operand.vmem [shape: bf16[4,32,8], index: 3, kind: input, shape index: {}]
  %s4 = inlined_call_operand.vmem [shape: f32[4,1,8], index: 4, kind: input, shape index: {}]
  %s5 = inlined_call_operand.vmem [shape: bf16[4,32,8], index: 5, kind: input, shape index: {}]
  %s6 = inlined_call_operand.vmem [shape: f32[4,1,8], index: 6, kind: input, shape index: {}]
  %s7 = inlined_call_operand.vmem [shape: bf16[4,8,32], index: 7, kind: input, shape index: {}]
  %s8 = inlined_call_operand.vmem [shape: f32[1,32], index: 8, kind: input, shape index: {}]
  %s9 = inlined_call_operand.hbm [shape: f32[16,32], index: 9, kind: output, shape index: {}]
  %s10 = sld [smem:[#allocation0]]
  $region107: #{tpu_custom_call.1} parent=0
    _
  %s12 = ssub.s32 1, %s10
  %s13 = scalar_select 0, %s12, %s10
  $region1: #{tpu_custom_call.1} parent=0
    #allocation2 [shape = 'u8[32768]{0}', space=vmem, size = 0x8000, scoped, tag = 'input window, operand 2']
    #allocation3 [shape = 'u8[8192]{0}', space=vmem, size = 0x2000, scoped, tag = 'output window, operand 0']
    #allocation4 [shape = 's32[2]{0}', space=sflag, size = 0x8, scoped, tag = 'scoped memory for tpu_custom_call.1']
    %14 = vsyncpa [#allocation4], 0
    %s15 = scalar_lea.sflag [#allocation4], 1
    %16 = vsyncpa %s15, 0
    loop: start=0, step=1, limit=4
    $region2: #{tpu_custom_call.1} parent=1 // loop_pre_header
      _
    $region3: #{tpu_custom_call.1} parent=1 // loop_header
      %s18 = sphi 0, %s22
      %p19 = scmp.ge.s32.totalorder %s18, 4
      %s28 = sphi 0, %s30
      %s31 = sphi 0, %s28
      %s32 = sphi 0, %s31
      %s48 = sphi 0, %s32
      %s54 = sphi 0, %s56
      %s57 = sphi 0, %s54
      %s58 = sphi 0, %s57
      %s74 = sphi 0, %s58
      %s80 = sphi 0, %s82
      %s83 = sphi 0, %s80
      %s84 = sphi 0, %s83
      %s100 = sphi 0, %s84
      %s104 = sphi 0, %s104
      %s106 = sphi 0, %s104
      %s107 = sphi 0, %s106
      %s121 = sphi 0, %s107
      %s125 = sphi 0, %s125
      %s127 = sphi 0, %s125
      %s128 = sphi 0, %s127
      %s142 = sphi 0, %s128
      %s146 = sphi 0, %s146
      %s148 = sphi 0, %s146
      %s149 = sphi 0, %s148
      %s163 = sphi 0, %s149
      %s167 = sphi 0, %s167
      %s169 = sphi 0, %s167
      %s170 = sphi 0, %s169
      %s184 = sphi 0, %s170
      %s188 = sphi 0, %s188
      %s190 = sphi 0, %s188
      %s191 = sphi 0, %s190
      %s205 = sphi 0, %s191
      %s209 = sphi 0, %s209
      %s211 = sphi 0, %s209
      %s212 = sphi 0, %s211
      %s226 = sphi 0, %s212
      %s232 = sphi 0, %s234
      %s235 = sphi 0, %s232
      %s236 = sphi 0, %s235
      %s252 = sphi 0, %s236
    $region4: #{tpu_custom_call.1} parent=1 // loop_header_branch
      %21 = sbr.rel (%p19) target = $region8
    $region5: #{tpu_custom_call.1} parent=1 // loop_body
      %s23 = ssub.s32 %s18, 1
      %s24 = ssub.s32 %s18, 2
      %s25 = sadd.s32 %s18, 1
      %s26 = ssub.s32 %s18, %s25
      %p27 = scmp.eq.s32.totalorder %s26, 0
      %s29 = sadd.s32 %s28, 1
      %s30 = scalar_select %p27, %s28, %s29
      %p33 = pneg %p27
      %p34 = scmp.eq.s32.totalorder %s18, 1
      %p35 = por %p33, %p34
      %p36 = scmp.ne.s32.totalorder %s28, %s31
      %p37 = scmp.eq.s32.totalorder %s18, 0
      %p38 = por %p36, %p37
      %p39 = scmp.ne.s32.totalorder %s28, %s31
      %p40 = scmp.eq.s32.totalorder %s23, 1
      %p41 = por %p39, %p40
      %p42 = scmp.ne.s32.totalorder %s31, %s32
      %p43 = scmp.eq.s32.totalorder %s23, 0
      %p44 = por %p42, %p43
      %p45 = scmp.ne.s32.totalorder %s31, %s32
      %p46 = scmp.eq.s32.totalorder %s24, 1
      %p47 = por %p45, %p46
      %p49 = scmp.ne.s32.totalorder %s32, %s48
      %p50 = scmp.eq.s32.totalorder %s24, 0
      %p51 = por %p49, %p50
      %s52 = ssub.s32 %s18, %s25
      %p53 = scmp.eq.s32.totalorder %s52, 0
      %s55 = sadd.s32 %s54, 1
      %s56 = scalar_select %p53, %s54, %s55
      %p59 = pneg %p53
      %p60 = scmp.eq.s32.totalorder %s18, 1
      %p61 = por %p59, %p60
      %p62 = scmp.ne.s32.totalorder %s54, %s57
      %p63 = scmp.eq.s32.totalorder %s18, 0
      %p64 = por %p62, %p63
      %p65 = scmp.ne.s32.totalorder %s54, %s57
      %p66 = scmp.eq.s32.totalorder %s23, 1
      %p67 = por %p65, %p66
      %p68 = scmp.ne.s32.totalorder %s57, %s58
      %p69 = scmp.eq.s32.totalorder %s23, 0
      %p70 = por %p68, %p69
      %p71 = scmp.ne.s32.totalorder %s57, %s58
      %p72 = scmp.eq.s32.totalorder %s24, 1
      %p73 = por %p71, %p72
      %p75 = scmp.ne.s32.totalorder %s58, %s74
      %p76 = scmp.eq.s32.totalorder %s24, 0
      %p77 = por %p75, %p76
      %s78 = ssub.s32 %s18, %s25
      %p79 = scmp.eq.s32.totalorder %s78, 0
      %s81 = sadd.s32 %s80, 1
      %s82 = scalar_select %p79, %s80, %s81
      %p85 = pneg %p79
      %p86 = scmp.eq.s32.totalorder %s18, 1
      %p87 = por %p85, %p86
      %p88 = scmp.ne.s32.totalorder %s80, %s83
      %p89 = scmp.eq.s32.totalorder %s18, 0
      %p90 = por %p88, %p89
      %p91 = scmp.ne.s32.totalorder %s80, %s83
      %p92 = scmp.eq.s32.totalorder %s23, 1
      %p93 = por %p91, %p92
      %p94 = scmp.ne.s32.totalorder %s83, %s84
      %p95 = scmp.eq.s32.totalorder %s23, 0
      %p96 = por %p94, %p95
      %p97 = scmp.ne.s32.totalorder %s83, %s84
      %p98 = scmp.eq.s32.totalorder %s24, 1
      %p99 = por %p97, %p98
      %p101 = scmp.ne.s32.totalorder %s84, %s100
      %p102 = scmp.eq.s32.totalorder %s24, 0
      %p103 = por %p101, %p102
      %s105 = sadd.s32 %s104, 1
      %p108 = scmp.eq.s32.totalorder %s18, 1
      %p109 = scmp.ne.s32.totalorder %s104, %s106
      %p110 = scmp.eq.s32.totalorder %s18, 0
      %p111 = por %p109, %p110
      %p112 = scmp.ne.s32.totalorder %s104, %s106
      %p113 = scmp.eq.s32.totalorder %s23, 1
      %p114 = por %p112, %p113
      %p115 = scmp.ne.s32.totalorder %s106, %s107
      %p116 = scmp.eq.s32.totalorder %s23, 0
      %p117 = por %p115, %p116
      %p118 = scmp.ne.s32.totalorder %s106, %s107
      %p119 = scmp.eq.s32.totalorder %s24, 1
      %p120 = por %p118, %p119
      %p122 = scmp.ne.s32.totalorder %s107, %s121
      %p123 = scmp.eq.s32.totalorder %s24, 0
      %p124 = por %p122, %p123
      %s126 = sadd.s32 %s125, 1
      %p129 = scmp.eq.s32.totalorder %s18, 1
      %p130 = scmp.ne.s32.totalorder %s125, %s127
      %p131 = scmp.eq.s32.totalorder %s18, 0
      %p132 = por %p130, %p131
      %p133 = scmp.ne.s32.totalorder %s125, %s127
      %p134 = scmp.eq.s32.totalorder %s23, 1
      %p135 = por %p133, %p134
      %p136 = scmp.ne.s32.totalorder %s127, %s128
      %p137 = scmp.eq.s32.totalorder %s23, 0
      %p138 = por %p136, %p137
      %p139 = scmp.ne.s32.totalorder %s127, %s128
      %p140 = scmp.eq.s32.totalorder %s24, 1
      %p141 = por %p139, %p140
      %p143 = scmp.ne.s32.totalorder %s128, %s142
      %p144 = scmp.eq.s32.totalorder %s24, 0
      %p145 = por %p143, %p144
      %s147 = sadd.s32 %s146, 1
      %p150 = scmp.eq.s32.totalorder %s18, 1
      %p151 = scmp.ne.s32.totalorder %s146, %s148
      %p152 = scmp.eq.s32.totalorder %s18, 0
      %p153 = por %p151, %p152
      %p154 = scmp.ne.s32.totalorder %s146, %s148
      %p155 = scmp.eq.s32.totalorder %s23, 1
      %p156 = por %p154, %p155
      %p157 = scmp.ne.s32.totalorder %s148, %s149
      %p158 = scmp.eq.s32.totalorder %s23, 0
      %p159 = por %p157, %p158
      %p160 = scmp.ne.s32.totalorder %s148, %s149
      %p161 = scmp.eq.s32.totalorder %s24, 1
      %p162 = por %p160, %p161
      %p164 = scmp.ne.s32.totalorder %s149, %s163
      %p165 = scmp.eq.s32.totalorder %s24, 0
      %p166 = por %p164, %p165
      %s168 = sadd.s32 %s167, 1
      %p171 = scmp.eq.s32.totalorder %s18, 1
      %p172 = scmp.ne.s32.totalorder %s167, %s169
      %p173 = scmp.eq.s32.totalorder %s18, 0
      %p174 = por %p172, %p173
      %p175 = scmp.ne.s32.totalorder %s167, %s169
      %p176 = scmp.eq.s32.totalorder %s23, 1
      %p177 = por %p175, %p176
      %p178 = scmp.ne.s32.totalorder %s169, %s170
      %p179 = scmp.eq.s32.totalorder %s23, 0
      %p180 = por %p178, %p179
      %p181 = scmp.ne.s32.totalorder %s169, %s170
      %p182 = scmp.eq.s32.totalorder %s24, 1
      %p183 = por %p181, %p182
      %p185 = scmp.ne.s32.totalorder %s170, %s184
      %p186 = scmp.eq.s32.totalorder %s24, 0
      %p187 = por %p185, %p186
      %s189 = sadd.s32 %s188, 1
      %p192 = scmp.eq.s32.totalorder %s18, 1
      %p193 = scmp.ne.s32.totalorder %s188, %s190
      %p194 = scmp.eq.s32.totalorder %s18, 0
      %p195 = por %p193, %p194
      %p196 = scmp.ne.s32.totalorder %s188, %s190
      %p197 = scmp.eq.s32.totalorder %s23, 1
      %p198 = por %p196, %p197
      %p199 = scmp.ne.s32.totalorder %s190, %s191
      %p200 = scmp.eq.s32.totalorder %s23, 0
      %p201 = por %p199, %p200
      %p202 = scmp.ne.s32.totalorder %s190, %s191
      %p203 = scmp.eq.s32.totalorder %s24, 1
      %p204 = por %p202, %p203
      %p206 = scmp.ne.s32.totalorder %s191, %s205
      %p207 = scmp.eq.s32.totalorder %s24, 0
      %p208 = por %p206, %p207
      %s210 = sadd.s32 %s209, 1
      %p213 = scmp.eq.s32.totalorder %s18, 1
      %p214 = scmp.ne.s32.totalorder %s209, %s211
      %p215 = scmp.eq.s32.totalorder %s18, 0
      %p216 = por %p214, %p215
      %p217 = scmp.ne.s32.totalorder %s209, %s211
      %p218 = scmp.eq.s32.totalorder %s23, 1
      %p219 = por %p217, %p218
      %p220 = scmp.ne.s32.totalorder %s211, %s212
      %p221 = scmp.eq.s32.totalorder %s23, 0
      %p222 = por %p220, %p221
      %p223 = scmp.ne.s32.totalorder %s211, %s212
      %p224 = scmp.eq.s32.totalorder %s24, 1
      %p225 = por %p223, %p224
      %p227 = scmp.ne.s32.totalorder %s212, %s226
      %p228 = scmp.eq.s32.totalorder %s24, 0
      %p229 = por %p227, %p228
      %s230 = ssub.s32 %s18, %s25
      %p231 = scmp.eq.s32.totalorder %s230, 0
      %s233 = sadd.s32 %s232, 1
      %s234 = scalar_select %p231, %s232, %s233
      %p237 = pneg %p231
      %p238 = scmp.eq.s32.totalorder %s18, 1
      %p239 = por %p237, %p238
      %p240 = scmp.ne.s32.totalorder %s232, %s235
      %p241 = scmp.eq.s32.totalorder %s18, 0
      %p242 = por %p240, %p241
      %p243 = scmp.ne.s32.totalorder %s232, %s235
      %p244 = scmp.eq.s32.totalorder %s23, 1
      %p245 = por %p243, %p244
      %p246 = scmp.ne.s32.totalorder %s235, %s236
      %p247 = scmp.eq.s32.totalorder %s23, 0
      %p248 = por %p246, %p247
      %p249 = scmp.ne.s32.totalorder %s235, %s236
      %p250 = scmp.eq.s32.totalorder %s24, 1
      %p251 = por %p249, %p250
      %p253 = scmp.ne.s32.totalorder %s236, %s252
      %p254 = scmp.eq.s32.totalorder %s24, 0
      %p255 = por %p253, %p254
      %p256 = scmp.le.s32.totalorder 1, %s18
      %p257 = scmp.lt.s32.totalorder %s18, 3
      %p258 = pnand %p256, %p257
      %p259 = pneg %p258
      // Predicated region
      $region9: #{tpu_custom_call.1} parent=5 // pred_check
        _
      $region10: #{tpu_custom_call.1} parent=5 // pred_check_branch
        %261 = sbr.rel (%p258) target = $region12
      $region11: #{tpu_custom_call.1} parent=5 // pred_region
        %s262 = ssub.s32 %s18, 1
        // Predicated region
        $region13: #{tpu_custom_call.1} parent=11 // pred_check
          %p263 = pneg %p117
        $region14: #{tpu_custom_call.1} parent=11 // pred_check_branch
          %265 = sbr.rel (%p263) target = $region16
        $region15: #{tpu_custom_call.1} parent=11 // pred_region
          _
        $region16: #{tpu_custom_call.1} parent=11 // pred_fallthru
          _
        // Predicated region
        $region17: #{tpu_custom_call.1} parent=11 // pred_check
          %p266 = pneg %p138
        $region18: #{tpu_custom_call.1} parent=11 // pred_check_branch
          %268 = sbr.rel (%p266) target = $region20
        $region19: #{tpu_custom_call.1} parent=11 // pred_region
          _
        $region20: #{tpu_custom_call.1} parent=11 // pred_fallthru
          _
        // Predicated region
        $region21: #{tpu_custom_call.1} parent=11 // pred_check
          %p269 = pneg %p159
        $region22: #{tpu_custom_call.1} parent=11 // pred_check_branch
          %271 = sbr.rel (%p269) target = $region24
        $region23: #{tpu_custom_call.1} parent=11 // pred_region
          _
        $region24: #{tpu_custom_call.1} parent=11 // pred_fallthru
          _
        // Predicated region
        $region25: #{tpu_custom_call.1} parent=11 // pred_check
          %p272 = pneg %p180
        $region26: #{tpu_custom_call.1} parent=11 // pred_check_branch
          %274 = sbr.rel (%p272) target = $region28
        $region27: #{tpu_custom_call.1} parent=11 // pred_region
          _
        $region28: #{tpu_custom_call.1} parent=11 // pred_fallthru
          _
        // Predicated region
        $region29: #{tpu_custom_call.1} parent=11 // pred_check
          %p275 = pneg %p201
        $region30: #{tpu_custom_call.1} parent=11 // pred_check_branch
          %277 = sbr.rel (%p275) target = $region32
        $region31: #{tpu_custom_call.1} parent=11 // pred_region
          _
        $region32: #{tpu_custom_call.1} parent=11 // pred_fallthru
          _
        // Predicated region
        $region33: #{tpu_custom_call.1} parent=11 // pred_check
          %p278 = pneg %p222
        $region34: #{tpu_custom_call.1} parent=11 // pred_check_branch
          %280 = sbr.rel (%p278) target = $region36
        $region35: #{tpu_custom_call.1} parent=11 // pred_region
          _
        $region36: #{tpu_custom_call.1} parent=11 // pred_fallthru
          _
      $region12: #{tpu_custom_call.1} parent=5 // pred_fallthru
        _
      %p281 = scmp.lt.s32.totalorder %s18, 2
      // Predicated region
      $region37: #{tpu_custom_call.1} parent=5 // pred_check
        %p282 = pneg %p281
      $region38: #{tpu_custom_call.1} parent=5 // pred_check_branch
        %284 = sbr.rel (%p282) target = $region40
      $region39: #{tpu_custom_call.1} parent=5 // pred_region
        // Predicated region
        $region41: #{tpu_custom_call.1} parent=39 // pred_check
          %p285 = pneg %p38
        $region42: #{tpu_custom_call.1} parent=39 // pred_check_branch
          %287 = sbr.rel (%p285) target = $region44
        $region43: #{tpu_custom_call.1} parent=39 // pred_region
          %p288 = scmp.lt.s32.totalorder %s18, 1
          %s289 = scalar_select %p288, %s18, 1
          %s290 = smul.addr %s289, 8
          %s291 = scalar_lea.vmem %s0, %s290
        $region44: #{tpu_custom_call.1} parent=39 // pred_fallthru
          _
        // Predicated region
        $region45: #{tpu_custom_call.1} parent=39 // pred_check
          %p292 = pneg %p64
        $region46: #{tpu_custom_call.1} parent=39 // pred_check_branch
          %294 = sbr.rel (%p292) target = $region48
        $region47: #{tpu_custom_call.1} parent=39 // pred_region
          %p295 = scmp.lt.s32.totalorder %s18, 1
          %s296 = scalar_select %p295, %s18, 1
          %s297 = smul.addr %s296, 8
          %s298 = scalar_lea.vmem %s1, %s297
        $region48: #{tpu_custom_call.1} parent=39 // pred_fallthru
          _
        // Predicated region
        $region49: #{tpu_custom_call.1} parent=39 // pred_check
          %p299 = pneg %p90
        $region50: #{tpu_custom_call.1} parent=39 // pred_check_branch
          %301 = sbr.rel (%p299) target = $region52
        $region51: #{tpu_custom_call.1} parent=39 // pred_region
          %s302 = sand.u32 %s80, 1
          %s303 = sand.u32 %s80, 1
          %s304 = smul.addr %s303, 32
          %s305 = scalar_lea.vmem [#allocation2], %s304
          %s306 = smul.addr %s18, 8
          %s307 = scalar_lea.vmem %s2, %s306
          // Predicated region
          $region53: #{tpu_custom_call.1} parent=51 // pred_check
            _
          $region54: #{tpu_custom_call.1} parent=51 // pred_check_branch
            %309 = sbr.rel (0) target = $region56
          $region55: #{tpu_custom_call.1} parent=51 // pred_region
            // Predicated region
            $region57: #{tpu_custom_call.1} parent=55 // pred_check
              _
            $region58: #{tpu_custom_call.1} parent=55 // pred_check_branch
              %311 = sbr.rel (0) target = $region60
            $region59: #{tpu_custom_call.1} parent=55 // pred_region
              // Predicated region
              $region72: #{tpu_custom_call.1} parent=59 // pred_check
                _
              $region73: #{tpu_custom_call.1} parent=59 // pred_check_branch
                %333 = sbr.rel (0) target = $region75
              $region74: #{tpu_custom_call.1} parent=59 // pred_region
                loop: start=0, step=1, limit=1
                $region76: #{tpu_custom_call.1} parent=74 // loop_pre_header
                  _
                $region77: #{tpu_custom_call.1} parent=74 // loop_header
                  %s335 = sphi 0, %s339
                  %p336 = scmp.ge.s32.totalorder %s335, 1
                  %s340 = sphi %s307, %s307
                  %s341 = sphi %s305, %s305
                $region78: #{tpu_custom_call.1} parent=74 // loop_header_branch
                  %338 = sbr.rel (%p336) target = $region82
                $region79: #{tpu_custom_call.1} parent=74 // loop_body
                  %v342 = vld [vmem:[%s340] sm:$0xff]
                  %343 = vst [vmem:[%s341] sm:$0xff] %v342
                  %v344 = vld [vmem:[%s340 + $0x10] sm:$0xff]
                  %345 = vst [vmem:[%s341 + $0x8] sm:$0xff] %v344
                  %v346 = vld [vmem:[%s340 + $0x20] sm:$0xff]
                  %347 = vst [vmem:[%s341 + $0x10] sm:$0xff] %v346
                  %v348 = vld [vmem:[%s340 + $0x30] sm:$0xff]
                  %349 = vst [vmem:[%s341 + $0x18] sm:$0xff] %v348
                $region80: #{tpu_custom_call.1} parent=74 // loop_footer
                  %s339 = sadd.s32 1, %s335
                $region81: #{tpu_custom_call.1} parent=74 // loop_footer_branch
                  %334 = sbr.rel target = $region77
                $region82: #{tpu_custom_call.1} parent=74 // loop_exit
                  _
              $region75: #{tpu_custom_call.1} parent=59 // pred_fallthru
                _
              // Predicated region
              $region83: #{tpu_custom_call.1} parent=59 // pred_check
                _
              $region84: #{tpu_custom_call.1} parent=59 // pred_check_branch
                %351 = sbr.rel target = $region86
              $region85: #{tpu_custom_call.1} parent=59 // pred_region
                _
              $region86: #{tpu_custom_call.1} parent=59 // pred_fallthru
                _
            $region60: #{tpu_custom_call.1} parent=55 // pred_fallthru
              _
            // Predicated region
            $region61: #{tpu_custom_call.1} parent=55 // pred_check
              _
            $region62: #{tpu_custom_call.1} parent=55 // pred_check_branch
              %313 = sbr.rel target = $region64
            $region63: #{tpu_custom_call.1} parent=55 // pred_region
              %s315 = ssub.s32 256, 1
              loop: start=0, step=1, limit=1
              $region65: #{tpu_custom_call.1} parent=63 // loop_pre_header
                _
              $region66: #{tpu_custom_call.1} parent=63 // loop_header
                %s317 = sphi 0, %s321
                %p318 = scmp.ge.s32.totalorder %s317, 1
                %s322 = sphi %s307, %s307
                %s323 = sphi %s305, %s305
              $region67: #{tpu_custom_call.1} parent=63 // loop_header_branch
                %320 = sbr.rel (%p318) target = $region71
              $region68: #{tpu_custom_call.1} parent=63 // loop_body
                %v324 = vld [vmem:[%s322] sm:%s315]
                %325 = vst [vmem:[%s323] sm:%s315] %v324
                %v326 = vld [vmem:[%s322 + $0x10] sm:%s315]
                %327 = vst [vmem:[%s323 + $0x8] sm:%s315] %v326
                %v328 = vld [vmem:[%s322 + $0x20] sm:%s315]
                %329 = vst [vmem:[%s323 + $0x10] sm:%s315] %v328
                %v330 = vld [vmem:[%s322 + $0x30] sm:%s315]
                %331 = vst [vmem:[%s323 + $0x18] sm:%s315] %v330
              $region69: #{tpu_custom_call.1} parent=63 // loop_footer
                %s321 = sadd.s32 1, %s317
              $region70: #{tpu_custom_call.1} parent=63 // loop_footer_branch
                %316 = sbr.rel target = $region66
              $region71: #{tpu_custom_call.1} parent=63 // loop_exit
                _
            $region64: #{tpu_custom_call.1} parent=55 // pred_fallthru
              _
          $region56: #{tpu_custom_call.1} parent=51 // pred_fallthru
            _
          %352 = vnop
        $region52: #{tpu_custom_call.1} parent=39 // pred_fallthru
          _
      $region40: #{tpu_custom_call.1} parent=5 // pred_fallthru
        _
      %p353 = scmp.le.s32.totalorder 1, %s18
      %p354 = scmp.lt.s32.totalorder %s18, 3
      %p355 = pnand %p353, %p354
      %p356 = pneg %p355
      // Predicated region
      $region87: #{tpu_custom_call.1} parent=5 // pred_check
        _
      $region88: #{tpu_custom_call.1} parent=5 // pred_check_branch
        %358 = sbr.rel (%p355) target = $region90
      $region89: #{tpu_custom_call.1} parent=5 // pred_region
        %s359 = ssub.s32 %s18, 1
        %s360 = sand.u32 %s83, 1
        %s361 = sand.u32 %s83, 1
        %s362 = smul.addr %s361, 32
        %s363 = scalar_lea.vmem [#allocation2], %s362
        // Predicated region
        $region91: #{tpu_custom_call.1} parent=89 // pred_check
          %p364 = pneg %p96
        $region92: #{tpu_custom_call.1} parent=89 // pred_check_branch
          %366 = sbr.rel (%p364) target = $region94
        $region93: #{tpu_custom_call.1} parent=89 // pred_region
          _
        $region94: #{tpu_custom_call.1} parent=89 // pred_fallthru
          _
        %p367 = scmp.lt.s32.totalorder %s23, 1
        %s368 = scalar_select %p367, %s23, 1
        %s369 = smul.addr %s368, 8
        %s370 = scalar_lea.vmem %s0, %s369
        %p371 = pneg %p44
        %p372 = pneg %p41
        %p373 = scmp.lt.s32.totalorder %s23, 1
        %s374 = scalar_select %p373, %s23, 1
        %s375 = smul.addr %s374, 8
        %s376 = scalar_lea.vmem %s1, %s375
        %p377 = pneg %p70
        %p378 = pneg %p67
        %s379 = sand.u32 %s83, 1
        %s380 = sand.u32 %s83, 1
        %s381 = smul.addr %s380, 32
        %s382 = scalar_lea.vmem [#allocation2], %s381
        %p383 = pneg %p96
        %p384 = pneg %p93
        %p385 = pneg %p117
        %p386 = pneg %p114
        %p387 = pneg %p138
        %p388 = pneg %p135
        %p389 = pneg %p159
        %p390 = pneg %p156
        %p391 = pneg %p180
        %p392 = pneg %p177
        %p393 = pneg %p201
        %p394 = pneg %p198
        %p395 = pneg %p222
        %p396 = pneg %p219
        %p397 = pneg %p248
        %p398 = pneg %p245
        %s399 = sand.u32 %s235, 1
        %s400 = scalar_lea.sflag [#allocation4], %s399
        %s401 = sand.u32 %s235, 1
        %s402 = smul.addr %s401, 8
        %s403 = scalar_lea.vmem [#allocation3], %s402
        %p404 = scmp.lt.s32.totalorder %s23, 1
        %s405 = scalar_select %p404, %s23, 1
        %s406 = smul.addr %s405, 8
        %s407 = scalar_lea.vmem %s0, %s406
        %p408 = scmp.lt.s32.totalorder %s23, 1
        %s409 = scalar_select %p408, %s23, 1
        %s410 = smul.addr %s409, 8
        %s411 = scalar_lea.vmem %s1, %s410
        %v413 = vld [vmem:[%s407] sm:$0xff]
        %v414 = vpack.c.bf16 %v413, %v413
        %v415 = vld [vmem:[%s411] sm:$0xff]
        %v416 = vpack.c.bf16 %v415, %v415
        %v417 = vld [vmem:[%s3] sm:$0xf]
        %v418 = vld [vmem:[%s3 + $0x4] sm:$0xf]
        %v419 = vld [vmem:[%s3 + $0x8] sm:$0xf]
        %v420 = vld [vmem:[%s3 + $0xc] sm:$0xf]
        %v421 = vld [vmem:[%s4] sm:$0x1]
        %v423 = vlaneseq
        %v424 = vshrl.u32 %v423, 7
        %v425 = vsub.s32 0, %v424
        %v426 = vrot.slane %v421, %v425
        %v432 = vunpack.c.l.b16 %v417
        %v433 = vunpack.c.l.b16 %v418
        %v434 = vunpack.c.l.b16 %v419
        %v435 = vunpack.c.l.b16 %v420
        %v436 = vpack.c.b16 %v433, %v432
        %v437 = vpack.c.b16 %v435, %v434
        %vm440 = vcmask 261120
        %v442 = vsel %vm440, %v414, 0
        %444 = vmatprep.subr.bf16.mxu0 0
        %445 = vmatpush1.bf16.msra.mxu0 0
        %446 = vmatprep.subr.bf16.mxu0 0
        %447 = vmatpush1.bf16.msra.mxu0 0
        %448 = vmatprep.subr.bf16.mxu0 0
        %449 = vmatpush1.bf16.msra.mxu0 0
        %450 = vmatprep.subr.bf16.mxu0 0
        %451 = vmatpush1.bf16.msra.mxu0 0
        %452 = vmatprep.subr.bf16.mxu0 0
        %453 = vmatpush1.bf16.msra.mxu0 0
        %454 = vmatprep.subr.bf16.mxu0 0
        %455 = vmatpush1.bf16.msra.mxu0 0
        %456 = vmatprep.subr.bf16.mxu0 0
        %457 = vmatpush1.bf16.msra.mxu0 %v437
        %458 = vmatprep.subr.bf16.mxu0 0
        %459 = vmatpush1.bf16.msra.mxu0 %v436
        %460 = vmatprep.subr.bf16.mxu0 0
        %461 = vmatpush2.bf16.msra.mxu0 0
        %462 = vmatprep.subr.bf16.mxu0 0
        %463 = vmatpush2.bf16.msra.mxu0 0
        %464 = vmatprep.subr.bf16.mxu0 0
        %465 = vmatpush2.bf16.msra.mxu0 0
        %466 = vmatprep.subr.bf16.mxu0 0
        %467 = vmatpush2.bf16.msra.mxu0 0
        %468 = vmatprep.subr.bf16.mxu0 0
        %469 = vmatpush2.bf16.msra.mxu0 0
        %470 = vmatprep.subr.bf16.mxu0 0
        %471 = vmatpush2.bf16.msra.mxu0 0
        %472 = vmatprep.subr.bf16.mxu0 0
        %473 = vmatpush2.bf16.msra.mxu0 0
        %474 = vmatprep.subr.bf16.mxu0 0
        %475 = vmatpush2.bf16.msra.mxu0 0
        %476 = vmatprep.mubr.bf16.mxu0 0
        %477 = vmatmul.mubr.bf16.gmra.mxu0 %v442
        %v478 = vpop.f32.mrf.mxu0
        %v479 = vadd.f32 %v426, %v478
        %v480 = vpop.f32.mrf.mxu0
        %v481 = vpop.f32.mrf.mxu0
        %v482 = vpop.f32.mrf.mxu0
        %483 = vdwg.mxu0
        %v484 = vld [vmem:[%s5] sm:$0xf]
        %v485 = vld [vmem:[%s5 + $0x4] sm:$0xf]
        %v486 = vld [vmem:[%s5 + $0x8] sm:$0xf]
        %v487 = vld [vmem:[%s5 + $0xc] sm:$0xf]
        %v488 = vld [vmem:[%s6] sm:$0x1]
        %v490 = vlaneseq
        %v491 = vshrl.u32 %v490, 7
        %v492 = vsub.s32 0, %v491
        %v493 = vrot.slane %v488, %v492
        %v499 = vunpack.c.l.b16 %v484
        %v500 = vunpack.c.l.b16 %v485
        %v501 = vunpack.c.l.b16 %v486
        %v502 = vunpack.c.l.b16 %v487
        %v503 = vpack.c.b16 %v500, %v499
        %v504 = vpack.c.b16 %v502, %v501
        %v508 = vsel %vm440, %v416, 0
        %510 = vmatprep.subr.bf16.mxu0 0
        %511 = vmatpush1.bf16.msra.mxu0 0
        %512 = vmatprep.subr.bf16.mxu0 0
        %513 = vmatpush1.bf16.msra.mxu0 0
        %514 = vmatprep.subr.bf16.mxu0 0
        %515 = vmatpush1.bf16.msra.mxu0 0
        %516 = vmatprep.subr.bf16.mxu0 0
        %517 = vmatpush1.bf16.msra.mxu0 0
        %518 = vmatprep.subr.bf16.mxu0 0
        %519 = vmatpush1.bf16.msra.mxu0 0
        %520 = vmatprep.subr.bf16.mxu0 0
        %521 = vmatpush1.bf16.msra.mxu0 0
        %522 = vmatprep.subr.bf16.mxu0 0
        %523 = vmatpush1.bf16.msra.mxu0 %v504
        %524 = vmatprep.subr.bf16.mxu0 0
        %525 = vmatpush1.bf16.msra.mxu0 %v503
        %526 = vmatprep.subr.bf16.mxu0 0
        %527 = vmatpush2.bf16.msra.mxu0 0
        %528 = vmatprep.subr.bf16.mxu0 0
        %529 = vmatpush2.bf16.msra.mxu0 0
        %530 = vmatprep.subr.bf16.mxu0 0
        %531 = vmatpush2.bf16.msra.mxu0 0
        %532 = vmatprep.subr.bf16.mxu0 0
        %533 = vmatpush2.bf16.msra.mxu0 0
        %534 = vmatprep.subr.bf16.mxu0 0
        %535 = vmatpush2.bf16.msra.mxu0 0
        %536 = vmatprep.subr.bf16.mxu0 0
        %537 = vmatpush2.bf16.msra.mxu0 0
        %538 = vmatprep.subr.bf16.mxu0 0
        %539 = vmatpush2.bf16.msra.mxu0 0
        %540 = vmatprep.subr.bf16.mxu0 0
        %541 = vmatpush2.bf16.msra.mxu0 0
        %542 = vmatprep.mubr.bf16.mxu0 0
        %543 = vmatmul.mubr.bf16.gmra.mxu0 %v508
        %v544 = vpop.f32.mrf.mxu0
        %v545 = vadd.f32 %v493, %v544
        %v546 = vpop.f32.mrf.mxu0
        %v547 = vpop.f32.mrf.mxu0
        %v548 = vpop.f32.mrf.mxu0
        %549 = vdwg.mxu0
        %v550 = vpack.c.bf16 %v479, %v479
        %v551 = vpack.c.bf16 %v545, %v545
        %s552 = scalar_lea.vmem %s3, 16
        %v553 = vld [vmem:[%s552] sm:$0xf]
        %v554 = vld [vmem:[%s552 + $0x4] sm:$0xf]
        %v555 = vld [vmem:[%s552 + $0x8] sm:$0xf]
        %v556 = vld [vmem:[%s552 + $0xc] sm:$0xf]
        %s557 = scalar_lea.vmem %s4, 1
        %v558 = vld [vmem:[%s557] sm:$0x1]
        %v560 = vlaneseq
        %v561 = vshrl.u32 %v560, 7
        %v562 = vsub.s32 0, %v561
        %v563 = vrot.slane %v558, %v562
        %v569 = vunpack.c.l.b16 %v553
        %v570 = vunpack.c.l.b16 %v554
        %v571 = vunpack.c.l.b16 %v555
        %v572 = vunpack.c.l.b16 %v556
        %v573 = vpack.c.b16 %v570, %v569
        %v574 = vpack.c.b16 %v572, %v571
        %577 = vmatprep.subr.bf16.mxu0 0
        %578 = vmatpush1.bf16.msra.mxu0 0
        %579 = vmatprep.subr.bf16.mxu0 0
        %580 = vmatpush1.bf16.msra.mxu0 0
        %581 = vmatprep.subr.bf16.mxu0 0
        %582 = vmatpush1.bf16.msra.mxu0 0
        %583 = vmatprep.subr.bf16.mxu0 0
        %584 = vmatpush1.bf16.msra.mxu0 0
        %585 = vmatprep.subr.bf16.mxu0 0
        %586 = vmatpush1.bf16.msra.mxu0 0
        %587 = vmatprep.subr.bf16.mxu0 0
        %588 = vmatpush1.bf16.msra.mxu0 0
        %589 = vmatprep.subr.bf16.mxu0 0
        %590 = vmatpush1.bf16.msra.mxu0 %v574
        %591 = vmatprep.subr.bf16.mxu0 0
        %592 = vmatpush1.bf16.msra.mxu0 %v573
        %593 = vmatprep.subr.bf16.mxu0 0
        %594 = vmatpush2.bf16.msra.mxu0 0
        %595 = vmatprep.subr.bf16.mxu0 0
        %596 = vmatpush2.bf16.msra.mxu0 0
        %597 = vmatprep.subr.bf16.mxu0 0
        %598 = vmatpush2.bf16.msra.mxu0 0
        %599 = vmatprep.subr.bf16.mxu0 0
        %600 = vmatpush2.bf16.msra.mxu0 0
        %601 = vmatprep.subr.bf16.mxu0 0
        %602 = vmatpush2.bf16.msra.mxu0 0
        %603 = vmatprep.subr.bf16.mxu0 0
        %604 = vmatpush2.bf16.msra.mxu0 0
        %605 = vmatprep.subr.bf16.mxu0 0
        %606 = vmatpush2.bf16.msra.mxu0 0
        %607 = vmatprep.subr.bf16.mxu0 0
        %608 = vmatpush2.bf16.msra.mxu0 0
        %609 = vmatprep.mubr.bf16.mxu0 0
        %610 = vmatmul.mubr.bf16.gmra.mxu0 %v442
        %v611 = vpop.f32.mrf.mxu0
        %v612 = vadd.f32 %v563, %v611
        %v613 = vpop.f32.mrf.mxu0
        %v614 = vpop.f32.mrf.mxu0
        %v615 = vpop.f32.mrf.mxu0
        %616 = vdwg.mxu0
        %s617 = scalar_lea.vmem %s5, 16
        %v618 = vld [vmem:[%s617] sm:$0xf]
        %v619 = vld [vmem:[%s617 + $0x4] sm:$0xf]
        %v620 = vld [vmem:[%s617 + $0x8] sm:$0xf]
        %v621 = vld [vmem:[%s617 + $0xc] sm:$0xf]
        %s622 = scalar_lea.vmem %s6, 1
        %v623 = vld [vmem:[%s622] sm:$0x1]
        %v625 = vlaneseq
        %v626 = vshrl.u32 %v625, 7
        %v627 = vsub.s32 0, %v626
        %v628 = vrot.slane %v623, %v627
        %v634 = vunpack.c.l.b16 %v618
        %v635 = vunpack.c.l.b16 %v619
        %v636 = vunpack.c.l.b16 %v620
        %v637 = vunpack.c.l.b16 %v621
        %v638 = vpack.c.b16 %v635, %v634
        %v639 = vpack.c.b16 %v637, %v636
        %642 = vmatprep.subr.bf16.mxu0 0
        %643 = vmatpush1.bf16.msra.mxu0 0
        %644 = vmatprep.subr.bf16.mxu0 0
        %645 = vmatpush1.bf16.msra.mxu0 0
        %646 = vmatprep.subr.bf16.mxu0 0
        %647 = vmatpush1.bf16.msra.mxu0 0
        %648 = vmatprep.subr.bf16.mxu0 0
        %649 = vmatpush1.bf16.msra.mxu0 0
        %650 = vmatprep.subr.bf16.mxu0 0
        %651 = vmatpush1.bf16.msra.mxu0 0
        %652 = vmatprep.subr.bf16.mxu0 0
        %653 = vmatpush1.bf16.msra.mxu0 0
        %654 = vmatprep.subr.bf16.mxu0 0
        %655 = vmatpush1.bf16.msra.mxu0 %v639
        %656 = vmatprep.subr.bf16.mxu0 0
        %657 = vmatpush1.bf16.msra.mxu0 %v638
        %658 = vmatprep.subr.bf16.mxu0 0
        %659 = vmatpush2.bf16.msra.mxu0 0
        %660 = vmatprep.subr.bf16.mxu0 0
        %661 = vmatpush2.bf16.msra.mxu0 0
        %662 = vmatprep.subr.bf16.mxu0 0
        %663 = vmatpush2.bf16.msra.mxu0 0
        %664 = vmatprep.subr.bf16.mxu0 0
        %665 = vmatpush2.bf16.msra.mxu0 0
        %666 = vmatprep.subr.bf16.mxu0 0
        %667 = vmatpush2.bf16.msra.mxu0 0
        %668 = vmatprep.subr.bf16.mxu0 0
        %669 = vmatpush2.bf16.msra.mxu0 0
        %670 = vmatprep.subr.bf16.mxu0 0
        %671 = vmatpush2.bf16.msra.mxu0 0
        %672 = vmatprep.subr.bf16.mxu0 0
        %673 = vmatpush2.bf16.msra.mxu0 0
        %674 = vmatprep.mubr.bf16.mxu0 0
        %675 = vmatmul.mubr.bf16.gmra.mxu0 %v508
        %v676 = vpop.f32.mrf.mxu0
        %v677 = vadd.f32 %v628, %v676
        %v678 = vpop.f32.mrf.mxu0
        %v679 = vpop.f32.mrf.mxu0
        %v680 = vpop.f32.mrf.mxu0
        %681 = vdwg.mxu0
        %v682 = vpack.c.bf16 %v612, %v612
        %v683 = vpack.c.bf16 %v677, %v677
        %s684 = scalar_lea.vmem %s3, 32
        %v685 = vld [vmem:[%s684] sm:$0xf]
        %v686 = vld [vmem:[%s684 + $0x4] sm:$0xf]
        %v687 = vld [vmem:[%s684 + $0x8] sm:$0xf]
        %v688 = vld [vmem:[%s684 + $0xc] sm:$0xf]
        %s689 = scalar_lea.vmem %s4, 2
        %v690 = vld [vmem:[%s689] sm:$0x1]
        %v692 = vlaneseq
        %v693 = vshrl.u32 %v692, 7
        %v694 = vsub.s32 0, %v693
        %v695 = vrot.slane %v690, %v694
        %v701 = vunpack.c.l.b16 %v685
        %v702 = vunpack.c.l.b16 %v686
        %v703 = vunpack.c.l.b16 %v687
        %v704 = vunpack.c.l.b16 %v688
        %v705 = vpack.c.b16 %v702, %v701
        %v706 = vpack.c.b16 %v704, %v703
        %709 = vmatprep.subr.bf16.mxu0 0
        %710 = vmatpush1.bf16.msra.mxu0 0
        %711 = vmatprep.subr.bf16.mxu0 0
        %712 = vmatpush1.bf16.msra.mxu0 0
        %713 = vmatprep.subr.bf16.mxu0 0
        %714 = vmatpush1.bf16.msra.mxu0 0
        %715 = vmatprep.subr.bf16.mxu0 0
        %716 = vmatpush1.bf16.msra.mxu0 0
        %717 = vmatprep.subr.bf16.mxu0 0
        %718 = vmatpush1.bf16.msra.mxu0 0
        %719 = vmatprep.subr.bf16.mxu0 0
        %720 = vmatpush1.bf16.msra.mxu0 0
        %721 = vmatprep.subr.bf16.mxu0 0
        %722 = vmatpush1.bf16.msra.mxu0 %v706
        %723 = vmatprep.subr.bf16.mxu0 0
        %724 = vmatpush1.bf16.msra.mxu0 %v705
        %725 = vmatprep.subr.bf16.mxu0 0
        %726 = vmatpush2.bf16.msra.mxu0 0
        %727 = vmatprep.subr.bf16.mxu0 0
        %728 = vmatpush2.bf16.msra.mxu0 0
        %729 = vmatprep.subr.bf16.mxu0 0
        %730 = vmatpush2.bf16.msra.mxu0 0
        %731 = vmatprep.subr.bf16.mxu0 0
        %732 = vmatpush2.bf16.msra.mxu0 0
        %733 = vmatprep.subr.bf16.mxu0 0
        %734 = vmatpush2.bf16.msra.mxu0 0
        %735 = vmatprep.subr.bf16.mxu0 0
        %736 = vmatpush2.bf16.msra.mxu0 0
        %737 = vmatprep.subr.bf16.mxu0 0
        %738 = vmatpush2.bf16.msra.mxu0 0
        %739 = vmatprep.subr.bf16.mxu0 0
        %740 = vmatpush2.bf16.msra.mxu0 0
        %741 = vmatprep.mubr.bf16.mxu0 0
        %742 = vmatmul.mubr.bf16.gmra.mxu0 %v442
        %v743 = vpop.f32.mrf.mxu0
        %v744 = vadd.f32 %v695, %v743
        %v745 = vpop.f32.mrf.mxu0
        %v746 = vpop.f32.mrf.mxu0
        %v747 = vpop.f32.mrf.mxu0
        %748 = vdwg.mxu0
        %s749 = scalar_lea.vmem %s5, 32
        %v750 = vld [vmem:[%s749] sm:$0xf]
        %v751 = vld [vmem:[%s749 + $0x4] sm:$0xf]
        %v752 = vld [vmem:[%s749 + $0x8] sm:$0xf]
        %v753 = vld [vmem:[%s749 + $0xc] sm:$0xf]
        %s754 = scalar_lea.vmem %s6, 2
        %v755 = vld [vmem:[%s754] sm:$0x1]
        %v757 = vlaneseq
        %v758 = vshrl.u32 %v757, 7
        %v759 = vsub.s32 0, %v758
        %v760 = vrot.slane %v755, %v759
        %v766 = vunpack.c.l.b16 %v750
        %v767 = vunpack.c.l.b16 %v751
        %v768 = vunpack.c.l.b16 %v752
        %v769 = vunpack.c.l.b16 %v753
        %v770 = vpack.c.b16 %v767, %v766
        %v771 = vpack.c.b16 %v769, %v768
        %774 = vmatprep.subr.bf16.mxu0 0
        %775 = vmatpush1.bf16.msra.mxu0 0
        %776 = vmatprep.subr.bf16.mxu0 0
        %777 = vmatpush1.bf16.msra.mxu0 0
        %778 = vmatprep.subr.bf16.mxu0 0
        %779 = vmatpush1.bf16.msra.mxu0 0
        %780 = vmatprep.subr.bf16.mxu0 0
        %781 = vmatpush1.bf16.msra.mxu0 0
        %782 = vmatprep.subr.bf16.mxu0 0
        %783 = vmatpush1.bf16.msra.mxu0 0
        %784 = vmatprep.subr.bf16.mxu0 0
        %785 = vmatpush1.bf16.msra.mxu0 0
        %786 = vmatprep.subr.bf16.mxu0 0
        %787 = vmatpush1.bf16.msra.mxu0 %v771
        %788 = vmatprep.subr.bf16.mxu0 0
        %789 = vmatpush1.bf16.msra.mxu0 %v770
        %790 = vmatprep.subr.bf16.mxu0 0
        %791 = vmatpush2.bf16.msra.mxu0 0
        %792 = vmatprep.subr.bf16.mxu0 0
        %793 = vmatpush2.bf16.msra.mxu0 0
        %794 = vmatprep.subr.bf16.mxu0 0
        %795 = vmatpush2.bf16.msra.mxu0 0
        %796 = vmatprep.subr.bf16.mxu0 0
        %797 = vmatpush2.bf16.msra.mxu0 0
        %798 = vmatprep.subr.bf16.mxu0 0
        %799 = vmatpush2.bf16.msra.mxu0 0
        %800 = vmatprep.subr.bf16.mxu0 0
        %801 = vmatpush2.bf16.msra.mxu0 0
        %802 = vmatprep.subr.bf16.mxu0 0
        %803 = vmatpush2.bf16.msra.mxu0 0
        %804 = vmatprep.subr.bf16.mxu0 0
        %805 = vmatpush2.bf16.msra.mxu0 0
        %806 = vmatprep.mubr.bf16.mxu0 0
        %807 = vmatmul.mubr.bf16.gmra.mxu0 %v508
        %v808 = vpop.f32.mrf.mxu0
        %v809 = vadd.f32 %v760, %v808
        %v810 = vpop.f32.mrf.mxu0
        %v811 = vpop.f32.mrf.mxu0
        %v812 = vpop.f32.mrf.mxu0
        %813 = vdwg.mxu0
        %v814 = vpack.c.bf16 %v744, %v744
        %v815 = vpack.c.bf16 %v809, %v809
        %s816 = scalar_lea.vmem %s3, 48
        %v817 = vld [vmem:[%s816] sm:$0xf]
        %v818 = vld [vmem:[%s816 + $0x4] sm:$0xf]
        %v819 = vld [vmem:[%s816 + $0x8] sm:$0xf]
        %v820 = vld [vmem:[%s816 + $0xc] sm:$0xf]
        %s821 = scalar_lea.vmem %s4, 3
        %v822 = vld [vmem:[%s821] sm:$0x1]
        %v824 = vlaneseq
        %v825 = vshrl.u32 %v824, 7
        %v826 = vsub.s32 0, %v825
        %v827 = vrot.slane %v822, %v826
        %v833 = vunpack.c.l.b16 %v817
        %v834 = vunpack.c.l.b16 %v818
        %v835 = vunpack.c.l.b16 %v819
        %v836 = vunpack.c.l.b16 %v820
        %v837 = vpack.c.b16 %v834, %v833
        %v838 = vpack.c.b16 %v836, %v835
        %841 = vmatprep.subr.bf16.mxu0 0
        %842 = vmatpush1.bf16.msra.mxu0 0
        %843 = vmatprep.subr.bf16.mxu0 0
        %844 = vmatpush1.bf16.msra.mxu0 0
        %845 = vmatprep.subr.bf16.mxu0 0
        %846 = vmatpush1.bf16.msra.mxu0 0
        %847 = vmatprep.subr.bf16.mxu0 0
        %848 = vmatpush1.bf16.msra.mxu0 0
        %849 = vmatprep.subr.bf16.mxu0 0
        %850 = vmatpush1.bf16.msra.mxu0 0
        %851 = vmatprep.subr.bf16.mxu0 0
        %852 = vmatpush1.bf16.msra.mxu0 0
        %853 = vmatprep.subr.bf16.mxu0 0
        %854 = vmatpush1.bf16.msra.mxu0 %v838
        %855 = vmatprep.subr.bf16.mxu0 0
        %856 = vmatpush1.bf16.msra.mxu0 %v837
        %857 = vmatprep.subr.bf16.mxu0 0
        %858 = vmatpush2.bf16.msra.mxu0 0
        %859 = vmatprep.subr.bf16.mxu0 0
        %860 = vmatpush2.bf16.msra.mxu0 0
        %861 = vmatprep.subr.bf16.mxu0 0
        %862 = vmatpush2.bf16.msra.mxu0 0
        %863 = vmatprep.subr.bf16.mxu0 0
        %864 = vmatpush2.bf16.msra.mxu0 0
        %865 = vmatprep.subr.bf16.mxu0 0
        %866 = vmatpush2.bf16.msra.mxu0 0
        %867 = vmatprep.subr.bf16.mxu0 0
        %868 = vmatpush2.bf16.msra.mxu0 0
        %869 = vmatprep.subr.bf16.mxu0 0
        %870 = vmatpush2.bf16.msra.mxu0 0
        %871 = vmatprep.subr.bf16.mxu0 0
        %872 = vmatpush2.bf16.msra.mxu0 0
        %873 = vmatprep.mubr.bf16.mxu0 0
        %874 = vmatmul.mubr.bf16.gmra.mxu0 %v442
        %v875 = vpop.f32.mrf.mxu0
        %v876 = vadd.f32 %v827, %v875
        %v877 = vpop.f32.mrf.mxu0
        %v878 = vpop.f32.mrf.mxu0
        %v879 = vpop.f32.mrf.mxu0
        %880 = vdwg.mxu0
        %s881 = scalar_lea.vmem %s5, 48
        %v882 = vld [vmem:[%s881] sm:$0xf]
        %v883 = vld [vmem:[%s881 + $0x4] sm:$0xf]
        %v884 = vld [vmem:[%s881 + $0x8] sm:$0xf]
        %v885 = vld [vmem:[%s881 + $0xc] sm:$0xf]
        %s886 = scalar_lea.vmem %s6, 3
        %v887 = vld [vmem:[%s886] sm:$0x1]
        %v889 = vlaneseq
        %v890 = vshrl.u32 %v889, 7
        %v891 = vsub.s32 0, %v890
        %v892 = vrot.slane %v887, %v891
        %v898 = vunpack.c.l.b16 %v882
        %v899 = vunpack.c.l.b16 %v883
        %v900 = vunpack.c.l.b16 %v884
        %v901 = vunpack.c.l.b16 %v885
        %v902 = vpack.c.b16 %v899, %v898
        %v903 = vpack.c.b16 %v901, %v900
        %906 = vmatprep.subr.bf16.mxu0 0
        %907 = vmatpush1.bf16.msra.mxu0 0
        %908 = vmatprep.subr.bf16.mxu0 0
        %909 = vmatpush1.bf16.msra.mxu0 0
        %910 = vmatprep.subr.bf16.mxu0 0
        %911 = vmatpush1.bf16.msra.mxu0 0
        %912 = vmatprep.subr.bf16.mxu0 0
        %913 = vmatpush1.bf16.msra.mxu0 0
        %914 = vmatprep.subr.bf16.mxu0 0
        %915 = vmatpush1.bf16.msra.mxu0 0
        %916 = vmatprep.subr.bf16.mxu0 0
        %917 = vmatpush1.bf16.msra.mxu0 0
        %918 = vmatprep.subr.bf16.mxu0 0
        %919 = vmatpush1.bf16.msra.mxu0 %v903
        %920 = vmatprep.subr.bf16.mxu0 0
        %921 = vmatpush1.bf16.msra.mxu0 %v902
        %922 = vmatprep.subr.bf16.mxu0 0
        %923 = vmatpush2.bf16.msra.mxu0 0
        %924 = vmatprep.subr.bf16.mxu0 0
        %925 = vmatpush2.bf16.msra.mxu0 0
        %926 = vmatprep.subr.bf16.mxu0 0
        %927 = vmatpush2.bf16.msra.mxu0 0
        %928 = vmatprep.subr.bf16.mxu0 0
        %929 = vmatpush2.bf16.msra.mxu0 0
        %930 = vmatprep.subr.bf16.mxu0 0
        %931 = vmatpush2.bf16.msra.mxu0 0
        %932 = vmatprep.subr.bf16.mxu0 0
        %933 = vmatpush2.bf16.msra.mxu0 0
        %934 = vmatprep.subr.bf16.mxu0 0
        %935 = vmatpush2.bf16.msra.mxu0 0
        %936 = vmatprep.subr.bf16.mxu0 0
        %937 = vmatpush2.bf16.msra.mxu0 0
        %938 = vmatprep.mubr.bf16.mxu0 0
        %939 = vmatmul.mubr.bf16.gmra.mxu0 %v508
        %v940 = vpop.f32.mrf.mxu0
        %v941 = vadd.f32 %v892, %v940
        %v942 = vpop.f32.mrf.mxu0
        %v943 = vpop.f32.mrf.mxu0
        %v944 = vpop.f32.mrf.mxu0
        %945 = vdwg.mxu0
        %v946 = vpack.c.bf16 %v876, %v876
        %v947 = vpack.c.bf16 %v941, %v941
        %v948 = vld [vmem:[%s363] sm:$0xff]
        %v949 = vld [vmem:[%s363 + $0x8] sm:$0xff]
        %v950 = vld [vmem:[%s363 + $0x10] sm:$0xff]
        %v951 = vld [vmem:[%s363 + $0x18] sm:$0xff]
        %v952 = vpack.c.bf16 %v948, %v948
        %v953 = vpack.c.bf16 %v949, %v949
        %v954 = vpack.c.bf16 %v950, %v950
        %v955 = vpack.c.bf16 %v951, %v951
        %vm956 = vcmask 64512
        %v958 = vsel %vm956, %v550, 0
        %v961 = vsel %vm956, %v551, 0
        %963 = vmatprep.subr.bf16.mxu0 0
        %964 = vmatpush1.bf16.xpose.msra.mxu0 0
        %965 = vmatprep.subr.bf16.mxu0 0
        %966 = vmatpush1.bf16.xpose.msra.mxu0 0
        %967 = vmatprep.subr.bf16.mxu0 0
        %968 = vmatpush1.bf16.xpose.msra.mxu0 0
        %969 = vmatprep.subr.bf16.mxu0 0
        %970 = vmatpush1.bf16.xpose.msra.mxu0 0
        %971 = vmatprep.subr.bf16.mxu0 0
        %972 = vmatpush1.bf16.xpose.msra.mxu0 0
        %973 = vmatprep.subr.bf16.mxu0 0
        %974 = vmatpush1.bf16.xpose.msra.mxu0 0
        %975 = vmatprep.subr.bf16.mxu0 0
        %976 = vmatpush1.bf16.xpose.msra.mxu0 0
        %977 = vmatprep.subr.bf16.mxu0 0
        %978 = vmatpush1.bf16.xpose.msra.mxu0 %v961
        %979 = vmatprep.subr.bf16.mxu0 0
        %980 = vmatpush2.bf16.xpose.msra.mxu0 0
        %981 = vmatprep.subr.bf16.mxu0 0
        %982 = vmatpush2.bf16.xpose.msra.mxu0 0
        %983 = vmatprep.subr.bf16.mxu0 0
        %984 = vmatpush2.bf16.xpose.msra.mxu0 0
        %985 = vmatprep.subr.bf16.mxu0 0
        %986 = vmatpush2.bf16.xpose.msra.mxu0 0
        %987 = vmatprep.subr.bf16.mxu0 0
        %988 = vmatpush2.bf16.xpose.msra.mxu0 0
        %989 = vmatprep.subr.bf16.mxu0 0
        %990 = vmatpush2.bf16.xpose.msra.mxu0 0
        %991 = vmatprep.subr.bf16.mxu0 0
        %992 = vmatpush2.bf16.xpose.msra.mxu0 0
        %993 = vmatprep.subr.bf16.mxu0 0
        %994 = vmatpush2.bf16.xpose.msra.mxu0 0
        %995 = vmatprep.mubr.bf16.mxu0 0
        %996 = vmatmul.mubr.bf16.gmra.mxu0 %v958
        %v997 = vpop.f32.mrf.mxu0
        %v998 = vadd.f32 0.0, %v997
        %v999 = vpop.f32.mrf.mxu0
        %v1000 = vpop.f32.mrf.mxu0
        %v1001 = vpop.f32.mrf.mxu0
        %1002 = vdwg.mxu0
        %v1004 = vsel %vm956, %v682, 0
        %v1007 = vsel %vm956, %v683, 0
        %1009 = vmatprep.subr.bf16.mxu0 0
        %1010 = vmatpush1.bf16.xpose.msra.mxu0 0
        %1011 = vmatprep.subr.bf16.mxu0 0
        %1012 = vmatpush1.bf16.xpose.msra.mxu0 0
        %1013 = vmatprep.subr.bf16.mxu0 0
        %1014 = vmatpush1.bf16.xpose.msra.mxu0 0
        %1015 = vmatprep.subr.bf16.mxu0 0
        %1016 = vmatpush1.bf16.xpose.msra.mxu0 0
        %1017 = vmatprep.subr.bf16.mxu0 0
        %1018 = vmatpush1.bf16.xpose.msra.mxu0 0
        %1019 = vmatprep.subr.bf16.mxu0 0
        %1020 = vmatpush1.bf16.xpose.msra.mxu0 0
        %1021 = vmatprep.subr.bf16.mxu0 0
        %1022 = vmatpush1.bf16.xpose.msra.mxu0 0
        %1023 = vmatprep.subr.bf16.mxu0 0
        %1024 = vmatpush1.bf16.xpose.msra.mxu0 %v1007
        %1025 = vmatprep.subr.bf16.mxu0 0
        %1026 = vmatpush2.bf16.xpose.msra.mxu0 0
        %1027 = vmatprep.subr.bf16.mxu0 0
        %1028 = vmatpush2.bf16.xpose.msra.mxu0 0
        %1029 = vmatprep.subr.bf16.mxu0 0
        %1030 = vmatpush2.bf16.xpose.msra.mxu0 0
        %1031 = vmatprep.subr.bf16.mxu0 0
        %1032 = vmatpush2.bf16.xpose.msra.mxu0 0
        %1033 = vmatprep.subr.bf16.mxu0 0
        %1034 = vmatpush2.bf16.xpose.msra.mxu0 0
        %1035 = vmatprep.subr.bf16.mxu0 0
        %1036 = vmatpush2.bf16.xpose.msra.mxu0 0
        %1037 = vmatprep.subr.bf16.mxu0 0
        %1038 = vmatpush2.bf16.xpose.msra.mxu0 0
        %1039 = vmatprep.subr.bf16.mxu0 0
        %1040 = vmatpush2.bf16.xpose.msra.mxu0 0
        %1041 = vmatprep.mubr.bf16.mxu0 0
        %1042 = vmatmul.mubr.bf16.gmra.mxu0 %v1004
        %v1043 = vpop.f32.mrf.mxu0
        %v1044 = vadd.f32 0.0, %v1043
        %v1045 = vpop.f32.mrf.mxu0
        %v1046 = vpop.f32.mrf.mxu0
        %v1047 = vpop.f32.mrf.mxu0
        %1048 = vdwg.mxu0
        %v1050 = vsel %vm956, %v814, 0
        %v1053 = vsel %vm956, %v815, 0
        %1055 = vmatprep.subr.bf16.mxu0 0
        %1056 = vmatpush1.bf16.xpose.msra.mxu0 0
        %1057 = vmatprep.subr.bf16.mxu0 0
        %1058 = vmatpush1.bf16.xpose.msra.mxu0 0
        %1059 = vmatprep.subr.bf16.mxu0 0
        %1060 = vmatpush1.bf16.xpose.msra.mxu0 0
        %1061 = vmatprep.subr.bf16.mxu0 0
        %1062 = vmatpush1.bf16.xpose.msra.mxu0 0
        %1063 = vmatprep.subr.bf16.mxu0 0
        %1064 = vmatpush1.bf16.xpose.msra.mxu0 0
        %1065 = vmatprep.subr.bf16.mxu0 0
        %1066 = vmatpush1.bf16.xpose.msra.mxu0 0
        %1067 = vmatprep.subr.bf16.mxu0 0
        %1068 = vmatpush1.bf16.xpose.msra.mxu0 0
        %1069 = vmatprep.subr.bf16.mxu0 0
        %1070 = vmatpush1.bf16.xpose.msra.mxu0 %v1053
        %1071 = vmatprep.subr.bf16.mxu0 0
        %1072 = vmatpush2.bf16.xpose.msra.mxu0 0
        %1073 = vmatprep.subr.bf16.mxu0 0
        %1074 = vmatpush2.bf16.xpose.msra.mxu0 0
        %1075 = vmatprep.subr.bf16.mxu0 0
        %1076 = vmatpush2.bf16.xpose.msra.mxu0 0
        %1077 = vmatprep.subr.bf16.mxu0 0
        %1078 = vmatpush2.bf16.xpose.msra.mxu0 0
        %1079 = vmatprep.subr.bf16.mxu0 0
        %1080 = vmatpush2.bf16.xpose.msra.mxu0 0
        %1081 = vmatprep.subr.bf16.mxu0 0
        %1082 = vmatpush2.bf16.xpose.msra.mxu0 0
        %1083 = vmatprep.subr.bf16.mxu0 0
        %1084 = vmatpush2.bf16.xpose.msra.mxu0 0
        %1085 = vmatprep.subr.bf16.mxu0 0
        %1086 = vmatpush2.bf16.xpose.msra.mxu0 0
        %1087 = vmatprep.mubr.bf16.mxu0 0
        %1088 = vmatmul.mubr.bf16.gmra.mxu0 %v1050
        %v1089 = vpop.f32.mrf.mxu0
        %v1090 = vadd.f32 0.0, %v1089
        %v1091 = vpop.f32.mrf.mxu0
        %v1092 = vpop.f32.mrf.mxu0
        %v1093 = vpop.f32.mrf.mxu0
        %1094 = vdwg.mxu0
        %v1096 = vsel %vm956, %v946, 0
        %v1099 = vsel %vm956, %v947, 0
        %1101 = vmatprep.subr.bf16.mxu0 0
        %1102 = vmatpush1.bf16.xpose.msra.mxu0 0
        %1103 = vmatprep.subr.bf16.mxu0 0
        %1104 = vmatpush1.bf16.xpose.msra.mxu0 0
        %1105 = vmatprep.subr.bf16.mxu0 0
        %1106 = vmatpush1.bf16.xpose.msra.mxu0 0
        %1107 = vmatprep.subr.bf16.mxu0 0
        %1108 = vmatpush1.bf16.xpose.msra.mxu0 0
        %1109 = vmatprep.subr.bf16.mxu0 0
        %1110 = vmatpush1.bf16.xpose.msra.mxu0 0
        %1111 = vmatprep.subr.bf16.mxu0 0
        %1112 = vmatpush1.bf16.xpose.msra.mxu0 0
        %1113 = vmatprep.subr.bf16.mxu0 0
        %1114 = vmatpush1.bf16.xpose.msra.mxu0 0
        %1115 = vmatprep.subr.bf16.mxu0 0
        %1116 = vmatpush1.bf16.xpose.msra.mxu0 %v1099
        %1117 = vmatprep.subr.bf16.mxu0 0
        %1118 = vmatpush2.bf16.xpose.msra.mxu0 0
        %1119 = vmatprep.subr.bf16.mxu0 0
        %1120 = vmatpush2.bf16.xpose.msra.mxu0 0
        %1121 = vmatprep.subr.bf16.mxu0 0
        %1122 = vmatpush2.bf16.xpose.msra.mxu0 0
        %1123 = vmatprep.subr.bf16.mxu0 0
        %1124 = vmatpush2.bf16.xpose.msra.mxu0 0
        %1125 = vmatprep.subr.bf16.mxu0 0
        %1126 = vmatpush2.bf16.xpose.msra.mxu0 0
        %1127 = vmatprep.subr.bf16.mxu0 0
        %1128 = vmatpush2.bf16.xpose.msra.mxu0 0
        %1129 = vmatprep.subr.bf16.mxu0 0
        %1130 = vmatpush2.bf16.xpose.msra.mxu0 0
        %1131 = vmatprep.subr.bf16.mxu0 0
        %1132 = vmatpush2.bf16.xpose.msra.mxu0 0
        %1133 = vmatprep.mubr.bf16.mxu0 0
        %1134 = vmatmul.mubr.bf16.gmra.mxu0 %v1096
        %v1135 = vpop.f32.mrf.mxu0
        %v1136 = vadd.f32 0.0, %v1135
        %v1137 = vpop.f32.mrf.mxu0
        %v1138 = vpop.f32.mrf.mxu0
        %v1139 = vpop.f32.mrf.mxu0
        %1140 = vdwg.mxu0
        %v1141 = vsel %vm956, %v998, -inf
        %1142 = vmax.xlane.f32.xlu0 %v1141
        %v1143 = vpop.xlane.xlu0 %1142
        %v1144 = vsel %vm956, %v1044, -inf
        %1145 = vmax.xlane.f32.xlu0 %v1144
        %v1146 = vpop.xlane.xlu0 %1145
        %v1147 = vsel %vm956, %v1090, -inf
        %1148 = vmax.xlane.f32.xlu0 %v1147
        %v1149 = vpop.xlane.xlu0 %1148
        %v1150 = vsel %vm956, %v1136, -inf
        %1151 = vmax.xlane.f32.xlu0 %v1150
        %v1152 = vpop.xlane.xlu0 %1151
        %v1153 = vsub.f32 %v998, %v1143
        %v1154 = vsub.f32 %v1044, %v1146
        %v1155 = vsub.f32 %v1090, %v1149
        %v1156 = vsub.f32 %v1136, %v1152
        %v1157 = vmul.f32 %v1153, 1.442695
        %v1158 = vpow.pop %v1157
        %v1159 = vmul.f32 %v1154, 1.442695
        %v1160 = vpow.pop %v1159
        %v1161 = vmul.f32 %v1155, 1.442695
        %v1162 = vpow.pop %v1161
        %v1163 = vmul.f32 %v1156, 1.442695
        %v1164 = vpow.pop %v1163
        %v1165 = vsel %vm956, %v1158, 0.0
        %1166 = vadd.xlane.f32.xlu0 %v1165
        %v1167 = vpop.xlane.xlu0 %1166
        %v1168 = vsel %vm956, %v1160, 0.0
        %1169 = vadd.xlane.f32.xlu0 %v1168
        %v1170 = vpop.xlane.xlu0 %1169
        %v1171 = vsel %vm956, %v1162, 0.0
        %1172 = vadd.xlane.f32.xlu0 %v1171
        %v1173 = vpop.xlane.xlu0 %1172
        %v1174 = vsel %vm956, %v1164, 0.0
        %1175 = vadd.xlane.f32.xlu0 %v1174
        %v1176 = vpop.xlane.xlu0 %1175
        %v1177 = vrcp.pop %v1167
        %v1178 = vrcp.pop %v1170
        %v1179 = vrcp.pop %v1173
        %v1180 = vrcp.pop %v1176
        %v1181 = vmul.f32 %v1158, %v1177
        %v1182 = vmul.f32 %v1160, %v1178
        %v1183 = vmul.f32 %v1162, %v1179
        %v1184 = vmul.f32 %v1164, %v1180
        %v1185 = vpack.c.bf16 %v1181, %v1181
        %v1186 = vpack.c.bf16 %v1182, %v1182
        %v1187 = vpack.c.bf16 %v1183, %v1183
        %v1188 = vpack.c.bf16 %v1184, %v1184
        %v1190 = vsel %vm956, %v1185, 0
        %vm1192 = vcmask 1043456
        %v1194 = vsel %vm1192, %v952, 0
        %1196 = vmatprep.subr.bf16.mxu0 0
        %1197 = vmatpush1.bf16.msra.mxu0 0
        %1198 = vmatprep.subr.bf16.mxu0 0
        %1199 = vmatpush1.bf16.msra.mxu0 0
        %1200 = vmatprep.subr.bf16.mxu0 0
        %1201 = vmatpush1.bf16.msra.mxu0 0
        %1202 = vmatprep.subr.bf16.mxu0 0
        %1203 = vmatpush1.bf16.msra.mxu0 0
        %1204 = vmatprep.subr.bf16.mxu0 0
        %1205 = vmatpush1.bf16.msra.mxu0 0
        %1206 = vmatprep.subr.bf16.mxu0 0
        %1207 = vmatpush1.bf16.msra.mxu0 0
        %1208 = vmatprep.subr.bf16.mxu0 0
        %1209 = vmatpush1.bf16.msra.mxu0 0
        %1210 = vmatprep.subr.bf16.mxu0 0
        %1211 = vmatpush1.bf16.msra.mxu0 %v1194
        %1212 = vmatprep.subr.bf16.mxu0 0
        %1213 = vmatpush2.bf16.msra.mxu0 0
        %1214 = vmatprep.subr.bf16.mxu0 0
        %1215 = vmatpush2.bf16.msra.mxu0 0
        %1216 = vmatprep.subr.bf16.mxu0 0
        %1217 = vmatpush2.bf16.msra.mxu0 0
        %1218 = vmatprep.subr.bf16.mxu0 0
        %1219 = vmatpush2.bf16.msra.mxu0 0
        %1220 = vmatprep.subr.bf16.mxu0 0
        %1221 = vmatpush2.bf16.msra.mxu0 0
        %1222 = vmatprep.subr.bf16.mxu0 0
        %1223 = vmatpush2.bf16.msra.mxu0 0
        %1224 = vmatprep.subr.bf16.mxu0 0
        %1225 = vmatpush2.bf16.msra.mxu0 0
        %1226 = vmatprep.subr.bf16.mxu0 0
        %1227 = vmatpush2.bf16.msra.mxu0 0
        %1228 = vmatprep.mubr.bf16.mxu0 0
        %1229 = vmatmul.mubr.bf16.gmra.mxu0 %v1190
        %v1230 = vpop.f32.mrf.mxu0
        %v1231 = vadd.f32 0.0, %v1230
        %v1232 = vpop.f32.mrf.mxu0
        %v1233 = vpop.f32.mrf.mxu0
        %v1234 = vpop.f32.mrf.mxu0
        %1235 = vdwg.mxu0
        %v1237 = vsel %vm956, %v1186, 0
        %v1240 = vsel %vm1192, %v953, 0
        %1242 = vmatprep.subr.bf16.mxu0 0
        %1243 = vmatpush1.bf16.msra.mxu0 0
        %1244 = vmatprep.subr.bf16.mxu0 0
        %1245 = vmatpush1.bf16.msra.mxu0 0
        %1246 = vmatprep.subr.bf16.mxu0 0
        %1247 = vmatpush1.bf16.msra.mxu0 0
        %1248 = vmatprep.subr.bf16.mxu0 0
        %1249 = vmatpush1.bf16.msra.mxu0 0
        %1250 = vmatprep.subr.bf16.mxu0 0
        %1251 = vmatpush1.bf16.msra.mxu0 0
        %1252 = vmatprep.subr.bf16.mxu0 0
        %1253 = vmatpush1.bf16.msra.mxu0 0
        %1254 = vmatprep.subr.bf16.mxu0 0
        %1255 = vmatpush1.bf16.msra.mxu0 0
        %1256 = vmatprep.subr.bf16.mxu0 0
        %1257 = vmatpush1.bf16.msra.mxu0 %v1240
        %1258 = vmatprep.subr.bf16.mxu0 0
        %1259 = vmatpush2.bf16.msra.mxu0 0
        %1260 = vmatprep.subr.bf16.mxu0 0
        %1261 = vmatpush2.bf16.msra.mxu0 0
        %1262 = vmatprep.subr.bf16.mxu0 0
        %1263 = vmatpush2.bf16.msra.mxu0 0
        %1264 = vmatprep.subr.bf16.mxu0 0
        %1265 = vmatpush2.bf16.msra.mxu0 0
        %1266 = vmatprep.subr.bf16.mxu0 0
        %1267 = vmatpush2.bf16.msra.mxu0 0
        %1268 = vmatprep.subr.bf16.mxu0 0
        %1269 = vmatpush2.bf16.msra.mxu0 0
        %1270 = vmatprep.subr.bf16.mxu0 0
        %1271 = vmatpush2.bf16.msra.mxu0 0
        %1272 = vmatprep.subr.bf16.mxu0 0
        %1273 = vmatpush2.bf16.msra.mxu0 0
        %1274 = vmatprep.mubr.bf16.mxu0 0
        %1275 = vmatmul.mubr.bf16.gmra.mxu0 %v1237
        %v1276 = vpop.f32.mrf.mxu0
        %v1277 = vadd.f32 0.0, %v1276
        %v1278 = vpop.f32.mrf.mxu0
        %v1279 = vpop.f32.mrf.mxu0
        %v1280 = vpop.f32.mrf.mxu0
        %1281 = vdwg.mxu0
        %v1283 = vsel %vm956, %v1187, 0
        %v1286 = vsel %vm1192, %v954, 0
        %1288 = vmatprep.subr.bf16.mxu0 0
        %1289 = vmatpush1.bf16.msra.mxu0 0
        %1290 = vmatprep.subr.bf16.mxu0 0
        %1291 = vmatpush1.bf16.msra.mxu0 0
        %1292 = vmatprep.subr.bf16.mxu0 0
        %1293 = vmatpush1.bf16.msra.mxu0 0
        %1294 = vmatprep.subr.bf16.mxu0 0
        %1295 = vmatpush1.bf16.msra.mxu0 0
        %1296 = vmatprep.subr.bf16.mxu0 0
        %1297 = vmatpush1.bf16.msra.mxu0 0
        %1298 = vmatprep.subr.bf16.mxu0 0
        %1299 = vmatpush1.bf16.msra.mxu0 0
        %1300 = vmatprep.subr.bf16.mxu0 0
        %1301 = vmatpush1.bf16.msra.mxu0 0
        %1302 = vmatprep.subr.bf16.mxu0 0
        %1303 = vmatpush1.bf16.msra.mxu0 %v1286
        %1304 = vmatprep.subr.bf16.mxu0 0
        %1305 = vmatpush2.bf16.msra.mxu0 0
        %1306 = vmatprep.subr.bf16.mxu0 0
        %1307 = vmatpush2.bf16.msra.mxu0 0
        %1308 = vmatprep.subr.bf16.mxu0 0
        %1309 = vmatpush2.bf16.msra.mxu0 0
        %1310 = vmatprep.subr.bf16.mxu0 0
        %1311 = vmatpush2.bf16.msra.mxu0 0
        %1312 = vmatprep.subr.bf16.mxu0 0
        %1313 = vmatpush2.bf16.msra.mxu0 0
        %1314 = vmatprep.subr.bf16.mxu0 0
        %1315 = vmatpush2.bf16.msra.mxu0 0
        %1316 = vmatprep.subr.bf16.mxu0 0
        %1317 = vmatpush2.bf16.msra.mxu0 0
        %1318 = vmatprep.subr.bf16.mxu0 0
        %1319 = vmatpush2.bf16.msra.mxu0 0
        %1320 = vmatprep.mubr.bf16.mxu0 0
        %1321 = vmatmul.mubr.bf16.gmra.mxu0 %v1283
        %v1322 = vpop.f32.mrf.mxu0
        %v1323 = vadd.f32 0.0, %v1322
        %v1324 = vpop.f32.mrf.mxu0
        %v1325 = vpop.f32.mrf.mxu0
        %v1326 = vpop.f32.mrf.mxu0
        %1327 = vdwg.mxu0
        %v1329 = vsel %vm956, %v1188, 0
        %v1332 = vsel %vm1192, %v955, 0
        %1334 = vmatprep.subr.bf16.mxu0 0
        %1335 = vmatpush1.bf16.msra.mxu0 0
        %1336 = vmatprep.subr.bf16.mxu0 0
        %1337 = vmatpush1.bf16.msra.mxu0 0
        %1338 = vmatprep.subr.bf16.mxu0 0
        %1339 = vmatpush1.bf16.msra.mxu0 0
        %1340 = vmatprep.subr.bf16.mxu0 0
        %1341 = vmatpush1.bf16.msra.mxu0 0
        %1342 = vmatprep.subr.bf16.mxu0 0
        %1343 = vmatpush1.bf16.msra.mxu0 0
        %1344 = vmatprep.subr.bf16.mxu0 0
        %1345 = vmatpush1.bf16.msra.mxu0 0
        %1346 = vmatprep.subr.bf16.mxu0 0
        %1347 = vmatpush1.bf16.msra.mxu0 0
        %1348 = vmatprep.subr.bf16.mxu0 0
        %1349 = vmatpush1.bf16.msra.mxu0 %v1332
        %1350 = vmatprep.subr.bf16.mxu0 0
        %1351 = vmatpush2.bf16.msra.mxu0 0
        %1352 = vmatprep.subr.bf16.mxu0 0
        %1353 = vmatpush2.bf16.msra.mxu0 0
        %1354 = vmatprep.subr.bf16.mxu0 0
        %1355 = vmatpush2.bf16.msra.mxu0 0
        %1356 = vmatprep.subr.bf16.mxu0 0
        %1357 = vmatpush2.bf16.msra.mxu0 0
        %1358 = vmatprep.subr.bf16.mxu0 0
        %1359 = vmatpush2.bf16.msra.mxu0 0
        %1360 = vmatprep.subr.bf16.mxu0 0
        %1361 = vmatpush2.bf16.msra.mxu0 0
        %1362 = vmatprep.subr.bf16.mxu0 0
        %1363 = vmatpush2.bf16.msra.mxu0 0
        %1364 = vmatprep.subr.bf16.mxu0 0
        %1365 = vmatpush2.bf16.msra.mxu0 0
        %1366 = vmatprep.mubr.bf16.mxu0 0
        %1367 = vmatmul.mubr.bf16.gmra.mxu0 %v1329
        %v1368 = vpop.f32.mrf.mxu0
        %v1369 = vadd.f32 0.0, %v1368
        %v1370 = vpop.f32.mrf.mxu0
        %v1371 = vpop.f32.mrf.mxu0
        %v1372 = vpop.f32.mrf.mxu0
        %1373 = vdwg.mxu0
        %v1374 = vpack.c.bf16 %v1231, %v1231
        %v1375 = vpack.c.bf16 %v1277, %v1277
        %v1376 = vpack.c.bf16 %v1323, %v1323
        %v1377 = vpack.c.bf16 %v1369, %v1369
        %v1378 = vld [vmem:[%s7] sm:$0xf]
        %s1379 = scalar_lea.vmem %s7, 4
        %v1380 = vld [vmem:[%s1379] sm:$0xf]
        %v1382 = vsel %vm956, %v1375, 0
        %v1385 = vsel %vm1192, %v1380, 0
        %1387 = vmatprep.subr.bf16.mxu0 0
        %1388 = vmatpush1.bf16.msra.mxu0 0
        %1389 = vmatprep.subr.bf16.mxu0 0
        %1390 = vmatpush1.bf16.msra.mxu0 0
        %1391 = vmatprep.subr.bf16.mxu0 0
        %1392 = vmatpush1.bf16.msra.mxu0 0
        %1393 = vmatprep.subr.bf16.mxu0 0
        %1394 = vmatpush1.bf16.msra.mxu0 0
        %1395 = vmatprep.subr.bf16.mxu0 0
        %1396 = vmatpush1.bf16.msra.mxu0 0
        %1397 = vmatprep.subr.bf16.mxu0 0
        %1398 = vmatpush1.bf16.msra.mxu0 0
        %1399 = vmatprep.subr.bf16.mxu0 0
        %1400 = vmatpush1.bf16.msra.mxu0 0
        %1401 = vmatprep.subr.bf16.mxu0 0
        %1402 = vmatpush1.bf16.msra.mxu0 %v1385
        %1403 = vmatprep.subr.bf16.mxu0 0
        %1404 = vmatpush2.bf16.msra.mxu0 0
        %1405 = vmatprep.subr.bf16.mxu0 0
        %1406 = vmatpush2.bf16.msra.mxu0 0
        %1407 = vmatprep.subr.bf16.mxu0 0
        %1408 = vmatpush2.bf16.msra.mxu0 0
        %1409 = vmatprep.subr.bf16.mxu0 0
        %1410 = vmatpush2.bf16.msra.mxu0 0
        %1411 = vmatprep.subr.bf16.mxu0 0
        %1412 = vmatpush2.bf16.msra.mxu0 0
        %1413 = vmatprep.subr.bf16.mxu0 0
        %1414 = vmatpush2.bf16.msra.mxu0 0
        %1415 = vmatprep.subr.bf16.mxu0 0
        %1416 = vmatpush2.bf16.msra.mxu0 0
        %1417 = vmatprep.subr.bf16.mxu0 0
        %1418 = vmatpush2.bf16.msra.mxu0 0
        %1419 = vmatprep.mubr.bf16.mxu0 0
        %1420 = vmatmul.mubr.bf16.gmra.mxu0 %v1382
        %v1421 = vpop.f32.mrf.mxu0
        %v1422 = vadd.f32 0.0, %v1421
        %v1423 = vpop.f32.mrf.mxu0
        %v1424 = vpop.f32.mrf.mxu0
        %v1425 = vpop.f32.mrf.mxu0
        %1426 = vdwg.mxu0
        %v1428 = vsel %vm956, %v1374, 0
        %v1431 = vsel %vm1192, %v1378, 0
        %1433 = vmatprep.subr.bf16.mxu0 0
        %1434 = vmatpush1.bf16.msra.mxu0 0
        %1435 = vmatprep.subr.bf16.mxu0 0
        %1436 = vmatpush1.bf16.msra.mxu0 0
        %1437 = vmatprep.subr.bf16.mxu0 0
        %1438 = vmatpush1.bf16.msra.mxu0 0
        %1439 = vmatprep.subr.bf16.mxu0 0
        %1440 = vmatpush1.bf16.msra.mxu0 0
        %1441 = vmatprep.subr.bf16.mxu0 0
        %1442 = vmatpush1.bf16.msra.mxu0 0
        %1443 = vmatprep.subr.bf16.mxu0 0
        %1444 = vmatpush1.bf16.msra.mxu0 0
        %1445 = vmatprep.subr.bf16.mxu0 0
        %1446 = vmatpush1.bf16.msra.mxu0 0
        %1447 = vmatprep.subr.bf16.mxu0 0
        %1448 = vmatpush1.bf16.msra.mxu0 %v1431
        %1449 = vmatprep.subr.bf16.mxu0 0
        %1450 = vmatpush2.bf16.msra.mxu0 0
        %1451 = vmatprep.subr.bf16.mxu0 0
        %1452 = vmatpush2.bf16.msra.mxu0 0
        %1453 = vmatprep.subr.bf16.mxu0 0
        %1454 = vmatpush2.bf16.msra.mxu0 0
        %1455 = vmatprep.subr.bf16.mxu0 0
        %1456 = vmatpush2.bf16.msra.mxu0 0
        %1457 = vmatprep.subr.bf16.mxu0 0
        %1458 = vmatpush2.bf16.msra.mxu0 0
        %1459 = vmatprep.subr.bf16.mxu0 0
        %1460 = vmatpush2.bf16.msra.mxu0 0
        %1461 = vmatprep.subr.bf16.mxu0 0
        %1462 = vmatpush2.bf16.msra.mxu0 0
        %1463 = vmatprep.subr.bf16.mxu0 0
        %1464 = vmatpush2.bf16.msra.mxu0 0
        %1465 = vmatprep.mubr.bf16.mxu0 0
        %1466 = vmatmul.mubr.bf16.gmra.mxu0 %v1428
        %v1467 = vpop.f32.mrf.mxu0
        %v1468 = vadd.f32 %v1422, %v1467
        %v1469 = vpop.f32.mrf.mxu0
        %v1470 = vpop.f32.mrf.mxu0
        %v1471 = vpop.f32.mrf.mxu0
        %1472 = vdwg.mxu0
        %s1473 = scalar_lea.vmem %s7, 8
        %v1474 = vld [vmem:[%s1473] sm:$0xf]
        %v1476 = vsel %vm956, %v1376, 0
        %v1479 = vsel %vm1192, %v1474, 0
        %1481 = vmatprep.subr.bf16.mxu0 0
        %1482 = vmatpush1.bf16.msra.mxu0 0
        %1483 = vmatprep.subr.bf16.mxu0 0
        %1484 = vmatpush1.bf16.msra.mxu0 0
        %1485 = vmatprep.subr.bf16.mxu0 0
        %1486 = vmatpush1.bf16.msra.mxu0 0
        %1487 = vmatprep.subr.bf16.mxu0 0
        %1488 = vmatpush1.bf16.msra.mxu0 0
        %1489 = vmatprep.subr.bf16.mxu0 0
        %1490 = vmatpush1.bf16.msra.mxu0 0
        %1491 = vmatprep.subr.bf16.mxu0 0
        %1492 = vmatpush1.bf16.msra.mxu0 0
        %1493 = vmatprep.subr.bf16.mxu0 0
        %1494 = vmatpush1.bf16.msra.mxu0 0
        %1495 = vmatprep.subr.bf16.mxu0 0
        %1496 = vmatpush1.bf16.msra.mxu0 %v1479
        %1497 = vmatprep.subr.bf16.mxu0 0
        %1498 = vmatpush2.bf16.msra.mxu0 0
        %1499 = vmatprep.subr.bf16.mxu0 0
        %1500 = vmatpush2.bf16.msra.mxu0 0
        %1501 = vmatprep.subr.bf16.mxu0 0
        %1502 = vmatpush2.bf16.msra.mxu0 0
        %1503 = vmatprep.subr.bf16.mxu0 0
        %1504 = vmatpush2.bf16.msra.mxu0 0
        %1505 = vmatprep.subr.bf16.mxu0 0
        %1506 = vmatpush2.bf16.msra.mxu0 0
        %1507 = vmatprep.subr.bf16.mxu0 0
        %1508 = vmatpush2.bf16.msra.mxu0 0
        %1509 = vmatprep.subr.bf16.mxu0 0
        %1510 = vmatpush2.bf16.msra.mxu0 0
        %1511 = vmatprep.subr.bf16.mxu0 0
        %1512 = vmatpush2.bf16.msra.mxu0 0
        %1513 = vmatprep.mubr.bf16.mxu0 0
        %1514 = vmatmul.mubr.bf16.gmra.mxu0 %v1476
        %v1515 = vpop.f32.mrf.mxu0
        %v1516 = vadd.f32 0.0, %v1515
        %v1517 = vpop.f32.mrf.mxu0
        %v1518 = vpop.f32.mrf.mxu0
        %v1519 = vpop.f32.mrf.mxu0
        %1520 = vdwg.mxu0
        %v1521 = vadd.f32 %v1468, %v1516
        %s1522 = scalar_lea.vmem %s7, 12
        %v1523 = vld [vmem:[%s1522] sm:$0xf]
        %v1525 = vsel %vm956, %v1377, 0
        %v1528 = vsel %vm1192, %v1523, 0
        %1530 = vmatprep.subr.bf16.mxu0 0
        %1531 = vmatpush1.bf16.msra.mxu0 0
        %1532 = vmatprep.subr.bf16.mxu0 0
        %1533 = vmatpush1.bf16.msra.mxu0 0
        %1534 = vmatprep.subr.bf16.mxu0 0
        %1535 = vmatpush1.bf16.msra.mxu0 0
        %1536 = vmatprep.subr.bf16.mxu0 0
        %1537 = vmatpush1.bf16.msra.mxu0 0
        %1538 = vmatprep.subr.bf16.mxu0 0
        %1539 = vmatpush1.bf16.msra.mxu0 0
        %1540 = vmatprep.subr.bf16.mxu0 0
        %1541 = vmatpush1.bf16.msra.mxu0 0
        %1542 = vmatprep.subr.bf16.mxu0 0
        %1543 = vmatpush1.bf16.msra.mxu0 0
        %1544 = vmatprep.subr.bf16.mxu0 0
        %1545 = vmatpush1.bf16.msra.mxu0 %v1528
        %1546 = vmatprep.subr.bf16.mxu0 0
        %1547 = vmatpush2.bf16.msra.mxu0 0
        %1548 = vmatprep.subr.bf16.mxu0 0
        %1549 = vmatpush2.bf16.msra.mxu0 0
        %1550 = vmatprep.subr.bf16.mxu0 0
        %1551 = vmatpush2.bf16.msra.mxu0 0
        %1552 = vmatprep.subr.bf16.mxu0 0
        %1553 = vmatpush2.bf16.msra.mxu0 0
        %1554 = vmatprep.subr.bf16.mxu0 0
        %1555 = vmatpush2.bf16.msra.mxu0 0
        %1556 = vmatprep.subr.bf16.mxu0 0
        %1557 = vmatpush2.bf16.msra.mxu0 0
        %1558 = vmatprep.subr.bf16.mxu0 0
        %1559 = vmatpush2.bf16.msra.mxu0 0
        %1560 = vmatprep.subr.bf16.mxu0 0
        %1561 = vmatpush2.bf16.msra.mxu0 0
        %1562 = vmatprep.mubr.bf16.mxu0 0
        %1563 = vmatmul.mubr.bf16.gmra.mxu0 %v1525
        %v1564 = vpop.f32.mrf.mxu0
        %v1565 = vadd.f32 0.0, %v1564
        %v1566 = vpop.f32.mrf.mxu0
        %v1567 = vpop.f32.mrf.mxu0
        %v1568 = vpop.f32.mrf.mxu0
        %1569 = vdwg.mxu0
        %v1570 = vadd.f32 %v1521, %v1565
        %v1571 = vld [vmem:[%s8] sm:$0x1]
        %v1573 = vlaneseq
        %v1574 = vshrl.u32 %v1573, 7
        %v1575 = vsub.s32 0, %v1574
        %v1576 = vrot.slane %v1571, %v1575
        %v1578 = vadd.f32 %v1570, %v1576
        %1579 = vst.msk [vmem:[%s403] sm:$0xff] %vm440, %v1578
        %s1580 = sand.u32 %s235, 1
        %s1581 = scalar_lea.sflag [#allocation4], %s1580
        %s1582 = sand.u32 %s235, 1
        %s1583 = smul.addr %s1582, 8
        %s1584 = scalar_lea.vmem [#allocation3], %s1583
        // Predicated region
        $region95: #{tpu_custom_call.1} parent=89 // pred_check
          %p1585 = pneg %p245
        $region96: #{tpu_custom_call.1} parent=89 // pred_check_branch
          %1587 = sbr.rel (%p1585) target = $region98
        $region97: #{tpu_custom_call.1} parent=89 // pred_region
          %s1589 = ssub.s32 128, 128
          %1590 = vsyncadd %s1581, %s1589
          %s1591 = smul.addr %s23, 128
          %s1592 = scalar_lea.hbm %s9, %s1591
          %s1594 = sshll.u32 %s1584, 4
          %s1595 = int_to_ptr.vmem [resolvable:$true] %s1594
          %1597 = dma.vmem_to_hbm [thread:$0]  %s1595, 128, %s1592, %s1581
        $region98: #{tpu_custom_call.1} parent=89 // pred_fallthru
          _
      $region90: #{tpu_custom_call.1} parent=5 // pred_fallthru
        _
      %p1598 = scmp.le.s32.totalorder 2, %s18
      // Predicated region
      $region99: #{tpu_custom_call.1} parent=5 // pred_check
        %p1599 = pneg %p1598
      $region100: #{tpu_custom_call.1} parent=5 // pred_check_branch
        %1601 = sbr.rel (%p1599) target = $region102
      $region101: #{tpu_custom_call.1} parent=5 // pred_region
        %s1602 = ssub.s32 %s18, 2
        // Predicated region
        $region103: #{tpu_custom_call.1} parent=101 // pred_check
          %p1603 = pneg %p251
        $region104: #{tpu_custom_call.1} parent=101 // pred_check_branch
          %1605 = sbr.rel (%p1603) target = $region106
        $region105: #{tpu_custom_call.1} parent=101 // pred_region
          %s1606 = sand.u32 %s236, 1
          %s1607 = scalar_lea.sflag [#allocation4], %s1606
          %s1608 = sand.u32 %s236, 1
          %s1609 = smul.addr %s1608, 8
          %s1610 = scalar_lea.vmem [#allocation3], %s1609
          %1611 = dma.done %s1607, 128
        $region106: #{tpu_custom_call.1} parent=101 // pred_fallthru
          _
      $region102: #{tpu_custom_call.1} parent=5 // pred_fallthru
        _
    $region6: #{tpu_custom_call.1} parent=1 // loop_footer
      %s22 = sadd.s32 1, %s18
    $region7: #{tpu_custom_call.1} parent=1 // loop_footer_branch
      %17 = sbr.rel target = $region3
    $region8: #{tpu_custom_call.1} parent=1 // loop_exit
      _
    %1612 = vsyncpa [#allocation4], 1
    %s1613 = scalar_lea.sflag [#allocation4], 1
    %1614 = vsyncpa %s1613, 1

</llo_original>
